<compile_context>
chip_gen: v7x
topology: tpu7x:2x2x1
jax: 0.10.0
libtpu: 0.0.40
codegen_flags: <defaults>
</compile_context>

<pallas_src>
import functools

import numpy as np
import jax
import jax.numpy as jnp
from jax import lax
from jax.experimental import pallas as pl
from jax.experimental.pallas import tpu as pltpu


def cbam_kernel(x_ref, w1t_ref, w2t_ref, tsp_ref, o_ref, *, nb):
    """One grid step: CBAM forward for `nb` batch elements.

    x_ref   : (nb, C, HW)   input block
    w1t_ref : (C, Cr)       1x1 conv #1 weight (transposed)
    w2t_ref : (Cr, C)       1x1 conv #2 weight (transposed)
    tsp_ref : (2*HW, HW)    7x7 spatial-conv operator matrix (avg rows ; max rows)
    o_ref   : (nb, C, HW)   output block
    """
    x = x_ref[...].astype(jnp.float32)                         # (nb, C, HW)

    # ---------------- Channel attention ----------------
    avg_c = jnp.mean(x, axis=2)                                # (nb, C)
    max_c = jnp.max(x, axis=2)                                 # (nb, C)
    pooled = jnp.concatenate([avg_c, max_c], axis=0)           # (2*nb, C)

    h = jnp.dot(pooled, w1t_ref[...].astype(jnp.float32),
                preferred_element_type=jnp.float32)            # (2*nb, Cr)
    h = jnp.maximum(h, 0.0)                                    # ReLU
    f = jnp.dot(h, w2t_ref[...].astype(jnp.float32),
                preferred_element_type=jnp.float32)            # (2*nb, C)

    ch_attn = jax.nn.sigmoid(f[:nb] + f[nb:])                  # (nb, C)
    y = x * ch_attn[:, :, None]                                # (nb, C, HW)

    # ---------------- Spatial attention ----------------
    avg_sp = jnp.mean(y, axis=1)                               # (nb, HW)  mean over C
    max_sp = jnp.max(y, axis=1)                                # (nb, HW)  max  over C
    maps = jnp.concatenate([avg_sp, max_sp], axis=1)           # (nb, 2*HW)

    conv = jnp.dot(maps, tsp_ref[...].astype(jnp.float32),
                   preferred_element_type=jnp.float32)         # (nb, HW)  == 7x7 conv, pad K//2
    sp_attn = jax.nn.sigmoid(conv)                             # (nb, HW)

    o_ref[...] = (y * sp_attn[:, None, :]).astype(o_ref.dtype)


def _spatial_conv_matrix(w_sp, H, W, K):
    """Fold the KxK (2-in, 1-out, zero-pad K//2) conv into a (2*H*W, H*W) matrix T
    such that  out_flat = concat(avg_flat, max_flat) @ T  (cross-correlation,
    matching torch.nn.Conv2d)."""
    pad = K // 2
    HW = H * W
    hi = np.arange(H)[:, None, None, None]     # input row
    wi = np.arange(W)[None, :, None, None]     # input col
    ho = np.arange(H)[None, None, :, None]     # output row
    wo = np.arange(W)[None, None, None, :]     # output col
    ki = hi - ho + pad
    kj = wi - wo + pad
    valid = (ki >= 0) & (ki < K) & (kj >= 0) & (kj < K)        # (H, W, H, W)
    ki_c = np.clip(ki, 0, K - 1)
    kj_c = np.clip(kj, 0, K - 1)
    planes = []
    for p in range(2):                                         # 0 = avg plane, 1 = max plane
        taps = w_sp[p][ki_c, kj_c]                             # (H, W, H, W)
        taps = jnp.where(jnp.asarray(valid), taps, 0.0)
        planes.append(taps.reshape(HW, HW))
    return jnp.concatenate(planes, axis=0).astype(jnp.float32)  # (2*HW, HW)


def _pick_block_batch(N, per_elem_bytes, target_bytes=1 << 20):
    """Largest divisor of N whose block stays ~<= target_bytes; keep grid >= 2
    steps when possible so both v7x TensorCores are used."""
    cap = max(1, min(N, target_bytes // max(per_elem_bytes, 1)))
    if N >= 2:
        cap = max(1, min(cap, N // 2))
    nb = 1
    for d in range(1, cap + 1):
        if N % d == 0:
            nb = d
    return nb


def cbam(x, w1, w2, w_sp, *, kernel_size=7, block_batch=None):
    """x: (N, C, H, W); w1: (C//r, C); w2: (C, C//r); w_sp: (2, K, K)."""
    N, C, H, W = x.shape
    Cr = w1.shape[0]
    HW = H * W
    K = kernel_size

    per_elem_bytes = C * HW * x.dtype.itemsize
    nb = block_batch if block_batch is not None else _pick_block_batch(N, per_elem_bytes)
    assert N % nb == 0, "block batch size must divide N"

    x2 = x.reshape(N, C, HW)
    w1t = jnp.asarray(w1, jnp.float32).T                        # (C, Cr)
    w2t = jnp.asarray(w2, jnp.float32).T                        # (Cr, C)
    tsp = _spatial_conv_matrix(jnp.asarray(w_sp, jnp.float32), H, W, K)  # (2*HW, HW)

    kern = functools.partial(cbam_kernel, nb=nb)
    out = pl.pallas_call(
        kern,
        out_shape=jax.ShapeDtypeStruct((N, C, HW), x.dtype),
        grid_spec=pltpu.PrefetchScalarGridSpec(
            num_scalar_prefetch=0,
            grid=(N // nb,),
            in_specs=[
                pl.BlockSpec((nb, C, HW), lambda n: (n, 0, 0)),
                # Weight blocks equal the full arrays (required: their trailing
                # dims are not (8,128)-divisible); constant index_map keeps them
                # resident in VMEM across grid steps.
                pl.BlockSpec((C, Cr), lambda n: (0, 0)),
                pl.BlockSpec((Cr, C), lambda n: (0, 0)),
                pl.BlockSpec((2 * HW, HW), lambda n: (0, 0)),
            ],
            out_specs=pl.BlockSpec((nb, C, HW), lambda n: (n, 0, 0)),
        ),
        compiler_params=pltpu.CompilerParams(
            dimension_semantics=("parallel",),
            vmem_limit_bytes=32 * 1024 * 1024,
        ),
    )(x2, w1t, w2t, tsp)
    return out.reshape(N, C, H, W)


def cbam_ref(x, w1, w2, w_sp, *, kernel_size=7):
    """Pure-JAX reference mirroring the PyTorch module."""
    K = kernel_size
    avg = jnp.mean(x, axis=(2, 3), keepdims=True)
    mx = jnp.max(x, axis=(2, 3), keepdims=True)

    def fc(v):                                                  # v: (N, C, 1, 1)
        v2 = v[..., 0, 0]                                       # (N, C)
        h = jnp.maximum(v2 @ w1.T, 0.0)                         # (N, Cr)
        o = h @ w2.T                                            # (N, C)
        return o[..., None, None]

    ch = jax.nn.sigmoid(fc(avg) + fc(mx))
    y = x * ch

    avg_sp = jnp.mean(y, axis=1, keepdims=True)
    max_sp = jnp.max(y, axis=1, keepdims=True)
    cat = jnp.concatenate([avg_sp, max_sp], axis=1)             # (N, 2, H, W)
    conv = lax.conv_general_dilated(
        cat, w_sp.reshape(1, 2, K, K), (1, 1),
        [(K // 2, K // 2), (K // 2, K // 2)],
        dimension_numbers=("NCHW", "OIHW", "NCHW"))
    sp = jax.nn.sigmoid(conv)
    return y * sp


if __name__ == "__main__":
    key = jax.random.PRNGKey(0)
    kx, k1, k2, k3 = jax.random.split(key, 4)

    N, C, H, W = 8, 32, 16, 16
    reduction, K = 16, 7
    Cr = C // reduction

    x = jax.random.normal(kx, (N, C, H, W), jnp.float32)
    w1 = jax.random.normal(k1, (Cr, C), jnp.float32) * 0.2       # Conv2d(C, C/r, 1) weight
    w2 = jax.random.normal(k2, (C, Cr), jnp.float32) * 0.2       # Conv2d(C/r, C, 1) weight
    w_sp = jax.random.normal(k3, (2, K, K), jnp.float32) * 0.05  # Conv2d(2, 1, 7) weight

    out = jax.block_until_ready(cbam(x, w1, w2, w_sp, kernel_size=K))
    ref = cbam_ref(x, w1, w2, w_sp, kernel_size=K)

    assert out.shape == (N, C, H, W)
    assert jnp.allclose(out, ref, atol=1e-4, rtol=1e-4), "mismatch vs reference"
    print("KERNEL_OK")
</pallas_src>

<mosaic_0001>
module attributes {stable_mosaic.version = 11 : i64} {
  func.func @cbam_kernel(%arg0: i32, %arg1: memref<4x32x256xf32, #tpu.memory_space<vmem>>, %arg2: memref<32x2xf32, #tpu.memory_space<vmem>>, %arg3: memref<2x32xf32, #tpu.memory_space<vmem>>, %arg4: memref<512x256xf32, #tpu.memory_space<vmem>>, %arg5: memref<4x32x256xf32, #tpu.memory_space<vmem>>) attributes {dimension_semantics = [#tpu.dimension_semantics<parallel>], iteration_bounds = array<i64: 2>, scalar_prefetch = 0 : i64, scratch_operands = 0 : i64, tpu.core_type = #tpu.core_type<tc>, window_params = [{transform_indices = @transform_0, window_bounds = array<i64: 4, 32, 256>}, {pipeline_mode = #tpu.pipeline_mode<synchronous>, transform_indices = @transform_1, window_bounds = array<i64: 32, 2>}, {pipeline_mode = #tpu.pipeline_mode<synchronous>, transform_indices = @transform_2, window_bounds = array<i64: 2, 32>}, {pipeline_mode = #tpu.pipeline_mode<synchronous>, transform_indices = @transform_3, window_bounds = array<i64: 512, 256>}, {transform_indices = @transform_4, window_bounds = array<i64: 4, 32, 256>}]} {
    %c0 = arith.constant 0 : index
    %c0_0 = arith.constant 0 : index
    %c0_1 = arith.constant 0 : index
    %0 = vector.load %arg1[%c0, %c0_0, %c0_1] : memref<4x32x256xf32, #tpu.memory_space<vmem>>, vector<4x32x256xf32>
    %cst = arith.constant dense<0.000000e+00> : vector<4x32xf32>
    %1 = vector.multi_reduction <add>, %0, %cst [2] : vector<4x32x256xf32> to vector<4x32xf32>
    %cst_2 = arith.constant 2.560000e+02 : f32
    %2 = vector.broadcast %cst_2 : f32 to vector<4x32xf32>
    %3 = arith.divf %1, %2 : vector<4x32xf32>
    %cst_3 = arith.constant dense<0xFF800000> : vector<4x32xf32>
    %4 = vector.multi_reduction <maximumf>, %0, %cst_3 [2] : vector<4x32x256xf32> to vector<4x32xf32>
    %5 = tpu.concatenate %3, %4 in 0 : vector<4x32xf32>, vector<4x32xf32> -> vector<8x32xf32>
    %c0_4 = arith.constant 0 : index
    %c0_5 = arith.constant 0 : index
    %6 = vector.load %arg2[%c0_4, %c0_5] : memref<32x2xf32, #tpu.memory_space<vmem>>, vector<32x2xf32>
    %cst_6 = arith.constant dense<0.000000e+00> : vector<8x2xf32>
    %7 = tpu.matmul %5, %6, %cst_6 {dimension_numbers = #tpu.dot_dimension_numbers<[1], [0], [0], [1], [0, 0, 1, 1], [], []>} : vector<8x32xf32>, vector<32x2xf32>, vector<8x2xf32> -> vector<8x2xf32>
    %cst_7 = arith.constant 0.000000e+00 : f32
    %8 = vector.broadcast %cst_7 : f32 to vector<8x2xf32>
    %9 = arith.maximumf %7, %8 : vector<8x2xf32>
    %c0_8 = arith.constant 0 : index
    %c0_9 = arith.constant 0 : index
    %10 = vector.load %arg3[%c0_8, %c0_9] : memref<2x32xf32, #tpu.memory_space<vmem>>, vector<2x32xf32>
    %cst_10 = arith.constant dense<0.000000e+00> : vector<8x32xf32>
    %11 = tpu.matmul %9, %10, %cst_10 {dimension_numbers = #tpu.dot_dimension_numbers<[1], [0], [0], [1], [0, 0, 1, 1], [], []>} : vector<8x2xf32>, vector<2x32xf32>, vector<8x32xf32> -> vector<8x32xf32>
    %12 = vector.extract_strided_slice %11 {offsets = [0, 0], sizes = [4, 32], strides = [1, 1]} : vector<8x32xf32> to vector<4x32xf32>
    %13 = vector.extract_strided_slice %11 {offsets = [4, 0], sizes = [4, 32], strides = [1, 1]} : vector<8x32xf32> to vector<4x32xf32>
    %14 = arith.addf %12, %13 : vector<4x32xf32>
    %15 = arith.negf %14 : vector<4x32xf32>
    %16 = math.exp %15 : vector<4x32xf32>
    %cst_11 = arith.constant 1.000000e+00 : f32
    %17 = vector.broadcast %cst_11 : f32 to vector<4x32xf32>
    %18 = arith.addf %17, %16 : vector<4x32xf32>
    %19 = arith.divf %17, %18 : vector<4x32xf32>
    %20 = vector.shape_cast %19 : vector<4x32xf32> to vector<4x32x1xf32>
    %21 = vector.broadcast %20 : vector<4x32x1xf32> to vector<4x32x256xf32>
    %22 = arith.mulf %0, %21 : vector<4x32x256xf32>
    %cst_12 = arith.constant dense<0.000000e+00> : vector<4x256xf32>
    %23 = vector.multi_reduction <add>, %22, %cst_12 [1] : vector<4x32x256xf32> to vector<4x256xf32>
    %cst_13 = arith.constant 3.200000e+01 : f32
    %24 = vector.broadcast %cst_13 : f32 to vector<4x256xf32>
    %25 = arith.divf %23, %24 : vector<4x256xf32>
    %cst_14 = arith.constant dense<0xFF800000> : vector<4x256xf32>
    %26 = vector.multi_reduction <maximumf>, %22, %cst_14 [1] : vector<4x32x256xf32> to vector<4x256xf32>
    %27 = tpu.concatenate %25, %26 in 1 : vector<4x256xf32>, vector<4x256xf32> -> vector<4x512xf32>
    %c0_15 = arith.constant 0 : index
    %c0_16 = arith.constant 0 : index
    %28 = vector.load %arg4[%c0_15, %c0_16] : memref<512x256xf32, #tpu.memory_space<vmem>>, vector<512x256xf32>
    %cst_17 = arith.constant dense<0.000000e+00> : vector<4x256xf32>
    %29 = tpu.matmul %27, %28, %cst_17 {dimension_numbers = #tpu.dot_dimension_numbers<[1], [0], [0], [1], [0, 0, 1, 1], [], []>} : vector<4x512xf32>, vector<512x256xf32>, vector<4x256xf32> -> vector<4x256xf32>
    %30 = arith.negf %29 : vector<4x256xf32>
    %31 = math.exp %30 : vector<4x256xf32>
    %cst_18 = arith.constant 1.000000e+00 : f32
    %32 = vector.broadcast %cst_18 : f32 to vector<4x256xf32>
    %33 = arith.addf %32, %31 : vector<4x256xf32>
    %34 = arith.divf %32, %33 : vector<4x256xf32>
    %35 = vector.shape_cast %34 : vector<4x256xf32> to vector<4x1x256xf32>
    %36 = vector.broadcast %35 : vector<4x1x256xf32> to vector<4x32x256xf32>
    %37 = arith.mulf %22, %36 : vector<4x32x256xf32>
    %c0_19 = arith.constant 0 : index
    %c0_20 = arith.constant 0 : index
    %c0_21 = arith.constant 0 : index
    %38 = vector.load %arg5[%c0_19, %c0_20, %c0_21] : memref<4x32x256xf32, #tpu.memory_space<vmem>>, vector<4x32x256xf32>
    tpu.vector_store %arg5[%c0_19, %c0_20, %c0_21], %37 {strides = array<i32>} : memref<4x32x256xf32, #tpu.memory_space<vmem>>, vector<4x32x256xf32>,
    return
  }
  func.func @transform_0(%arg0: i32) -> (i32, i32, i32) {
    %c0_i32 = arith.constant 0 : i32
    %c0_i32_0 = arith.constant 0 : i32
    %c0_i32_1 = arith.constant 0 : i32
    return %arg0, %c0_i32, %c0_i32_0 : i32, i32, i32
  }
  func.func @transform_1(%arg0: i32) -> (i32, i32) {
    %c0_i32 = arith.constant 0 : i32
    %c0_i32_0 = arith.constant 0 : i32
    %c0_i32_1 = arith.constant 0 : i32
    return %c0_i32, %c0_i32_0 : i32, i32
  }
  func.func @transform_2(%arg0: i32) -> (i32, i32) {
    %c0_i32 = arith.constant 0 : i32
    %c0_i32_0 = arith.constant 0 : i32
    %c0_i32_1 = arith.constant 0 : i32
    return %c0_i32, %c0_i32_0 : i32, i32
  }
  func.func @transform_3(%arg0: i32) -> (i32, i32) {
    %c0_i32 = arith.constant 0 : i32
    %c0_i32_0 = arith.constant 0 : i32
    %c0_i32_1 = arith.constant 0 : i32
    return %c0_i32, %c0_i32_0 : i32, i32
  }
  func.func @transform_4(%arg0: i32) -> (i32, i32, i32) {
    %c0_i32 = arith.constant 0 : i32
    %c0_i32_0 = arith.constant 0 : i32
    %c0_i32_1 = arith.constant 0 : i32
    return %arg0, %c0_i32, %c0_i32_0 : i32, i32, i32
  }
}

</mosaic_0001>

<llo_original>
// kernel: tpu_custom_call.1
$region0: #{tpu_custom_call.1}
  #allocation0 [shape = 'u32[]', space=smem, size = 0x4, offset = 0x4, fixed_abs, tag = 'smem constant byte address 0x4 - core index']
  #allocation1 [shape = 'u32[144,128]{1,0:T(1,128)}', space=vmem, size = 0x12000, scoped, tag = 'internal scratch']
  %s0 = inlined_call_operand.hbm [shape: f32[8,32,256], index: 0, kind: input, shape index: {}]
  %s1 = inlined_call_operand.vmem [shape: f32[32,2], index: 1, kind: input, shape index: {}]
  %s2 = inlined_call_operand.vmem [shape: f32[2,32], index: 2, kind: input, shape index: {}]
  %s3 = inlined_call_operand.hbm [shape: f32[512,256], index: 3, kind: input, shape index: {}]
  %s4 = inlined_call_operand.hbm [shape: f32[8,32,256], index: 4, kind: output, shape index: {}]
  %s5 = sld [smem:[#allocation0]]
  $region57: #{tpu_custom_call.1} parent=0
    _
  %s7 = ssub.s32 1, %s5
  %s8 = scalar_select 0, %s7, %s5
  $region1: #{tpu_custom_call.1} parent=0
    #allocation2 [shape = 'u8[262144]{0}', space=vmem, size = 0x40000, scoped, tag = 'input window, operand 0']
    #allocation3 [shape = 's32[2]{0}', space=sflag, size = 0x8, scoped, tag = 'scoped memory for tpu_custom_call.1']
    #allocation4 [shape = 's32[2]{0}', space=sflag, size = 0x8, scoped, tag = 'scoped memory for tpu_custom_call.1']
    #allocation5 [shape = 'u8[524288]{0}', space=vmem, size = 0x80000, scoped, tag = 'input window, operand 3, single buffered']
    #allocation6 [shape = 's32[1]{0}', space=sflag, size = 0x4, scoped, tag = 'scoped memory for tpu_custom_call.1']
    #allocation7 [shape = 'u8[262144]{0}', space=vmem, size = 0x40000, scoped, tag = 'output window, operand 0']
    %9 = vsyncpa [#allocation3], 0
    %s10 = scalar_lea.sflag [#allocation3], 1
    %11 = vsyncpa %s10, 0
    %12 = vsyncpa [#allocation6], 0
    %13 = vsyncpa [#allocation4], 0
    %s14 = scalar_lea.sflag [#allocation4], 1
    %15 = vsyncpa %s14, 0
    loop: start=0, step=1, limit=4
    $region2: #{tpu_custom_call.1} parent=1 // loop_pre_header
      _
    $region3: #{tpu_custom_call.1} parent=1 // loop_header
      %s17 = sphi 0, %s21
      %p18 = scmp.ge.s32.totalorder %s17, 4
      %s27 = sphi 0, %s29
      %s30 = sphi 0, %s27
      %s31 = sphi 0, %s30
      %s47 = sphi 0, %s31
      %s51 = sphi 0, %s51
      %s53 = sphi 0, %s51
      %s54 = sphi 0, %s53
      %s68 = sphi 0, %s54
      %s72 = sphi 0, %s72
      %s74 = sphi 0, %s72
      %s75 = sphi 0, %s74
      %s89 = sphi 0, %s75
      %s93 = sphi 0, %s93
      %s95 = sphi 0, %s93
      %s96 = sphi 0, %s95
      %s110 = sphi 0, %s96
      %s116 = sphi 0, %s118
      %s119 = sphi 0, %s116
      %s120 = sphi 0, %s119
      %s136 = sphi 0, %s120
    $region4: #{tpu_custom_call.1} parent=1 // loop_header_branch
      %20 = sbr.rel (%p18) target = $region8
    $region5: #{tpu_custom_call.1} parent=1 // loop_body
      %s22 = ssub.s32 %s17, 1
      %s23 = ssub.s32 %s17, 2
      %s24 = sadd.s32 %s17, 1
      %s25 = ssub.s32 %s17, %s24
      %p26 = scmp.eq.s32.totalorder %s25, 0
      %s28 = sadd.s32 %s27, 1
      %s29 = scalar_select %p26, %s27, %s28
      %p32 = pneg %p26
      %p33 = scmp.eq.s32.totalorder %s17, 1
      %p34 = por %p32, %p33
      %p35 = scmp.ne.s32.totalorder %s27, %s30
      %p36 = scmp.eq.s32.totalorder %s17, 0
      %p37 = por %p35, %p36
      %p38 = scmp.ne.s32.totalorder %s27, %s30
      %p39 = scmp.eq.s32.totalorder %s22, 1
      %p40 = por %p38, %p39
      %p41 = scmp.ne.s32.totalorder %s30, %s31
      %p42 = scmp.eq.s32.totalorder %s22, 0
      %p43 = por %p41, %p42
      %p44 = scmp.ne.s32.totalorder %s30, %s31
      %p45 = scmp.eq.s32.totalorder %s23, 1
      %p46 = por %p44, %p45
      %p48 = scmp.ne.s32.totalorder %s31, %s47
      %p49 = scmp.eq.s32.totalorder %s23, 0
      %p50 = por %p48, %p49
      %s52 = sadd.s32 %s51, 1
      %p55 = scmp.eq.s32.totalorder %s17, 1
      %p56 = scmp.ne.s32.totalorder %s51, %s53
      %p57 = scmp.eq.s32.totalorder %s17, 0
      %p58 = por %p56, %p57
      %p59 = scmp.ne.s32.totalorder %s51, %s53
      %p60 = scmp.eq.s32.totalorder %s22, 1
      %p61 = por %p59, %p60
      %p62 = scmp.ne.s32.totalorder %s53, %s54
      %p63 = scmp.eq.s32.totalorder %s22, 0
      %p64 = por %p62, %p63
      %p65 = scmp.ne.s32.totalorder %s53, %s54
      %p66 = scmp.eq.s32.totalorder %s23, 1
      %p67 = por %p65, %p66
      %p69 = scmp.ne.s32.totalorder %s54, %s68
      %p70 = scmp.eq.s32.totalorder %s23, 0
      %p71 = por %p69, %p70
      %s73 = sadd.s32 %s72, 1
      %p76 = scmp.eq.s32.totalorder %s17, 1
      %p77 = scmp.ne.s32.totalorder %s72, %s74
      %p78 = scmp.eq.s32.totalorder %s17, 0
      %p79 = por %p77, %p78
      %p80 = scmp.ne.s32.totalorder %s72, %s74
      %p81 = scmp.eq.s32.totalorder %s22, 1
      %p82 = por %p80, %p81
      %p83 = scmp.ne.s32.totalorder %s74, %s75
      %p84 = scmp.eq.s32.totalorder %s22, 0
      %p85 = por %p83, %p84
      %p86 = scmp.ne.s32.totalorder %s74, %s75
      %p87 = scmp.eq.s32.totalorder %s23, 1
      %p88 = por %p86, %p87
      %p90 = scmp.ne.s32.totalorder %s75, %s89
      %p91 = scmp.eq.s32.totalorder %s23, 0
      %p92 = por %p90, %p91
      %s94 = sadd.s32 %s93, 1
      %p97 = scmp.eq.s32.totalorder %s17, 1
      %p98 = scmp.ne.s32.totalorder %s93, %s95
      %p99 = scmp.eq.s32.totalorder %s17, 0
      %p100 = por %p98, %p99
      %p101 = scmp.ne.s32.totalorder %s93, %s95
      %p102 = scmp.eq.s32.totalorder %s22, 1
      %p103 = por %p101, %p102
      %p104 = scmp.ne.s32.totalorder %s95, %s96
      %p105 = scmp.eq.s32.totalorder %s22, 0
      %p106 = por %p104, %p105
      %p107 = scmp.ne.s32.totalorder %s95, %s96
      %p108 = scmp.eq.s32.totalorder %s23, 1
      %p109 = por %p107, %p108
      %p111 = scmp.ne.s32.totalorder %s96, %s110
      %p112 = scmp.eq.s32.totalorder %s23, 0
      %p113 = por %p111, %p112
      %s114 = ssub.s32 %s17, %s24
      %p115 = scmp.eq.s32.totalorder %s114, 0
      %s117 = sadd.s32 %s116, 1
      %s118 = scalar_select %p115, %s116, %s117
      %p121 = pneg %p115
      %p122 = scmp.eq.s32.totalorder %s17, 1
      %p123 = por %p121, %p122
      %p124 = scmp.ne.s32.totalorder %s116, %s119
      %p125 = scmp.eq.s32.totalorder %s17, 0
      %p126 = por %p124, %p125
      %p127 = scmp.ne.s32.totalorder %s116, %s119
      %p128 = scmp.eq.s32.totalorder %s22, 1
      %p129 = por %p127, %p128
      %p130 = scmp.ne.s32.totalorder %s119, %s120
      %p131 = scmp.eq.s32.totalorder %s22, 0
      %p132 = por %p130, %p131
      %p133 = scmp.ne.s32.totalorder %s119, %s120
      %p134 = scmp.eq.s32.totalorder %s23, 1
      %p135 = por %p133, %p134
      %p137 = scmp.ne.s32.totalorder %s120, %s136
      %p138 = scmp.eq.s32.totalorder %s23, 0
      %p139 = por %p137, %p138
      %p140 = scmp.le.s32.totalorder 1, %s17
      %p141 = scmp.lt.s32.totalorder %s17, 3
      %p142 = pnand %p140, %p141
      %p143 = pneg %p142
      // Predicated region
      $region9: #{tpu_custom_call.1} parent=5 // pred_check
        _
      $region10: #{tpu_custom_call.1} parent=5 // pred_check_branch
        %145 = sbr.rel (%p142) target = $region12
      $region11: #{tpu_custom_call.1} parent=5 // pred_region
        %s146 = ssub.s32 %s17, 1
        // Predicated region
        $region13: #{tpu_custom_call.1} parent=11 // pred_check
          %p147 = pneg %p64
        $region14: #{tpu_custom_call.1} parent=11 // pred_check_branch
          %149 = sbr.rel (%p147) target = $region16
        $region15: #{tpu_custom_call.1} parent=11 // pred_region
          _
        $region16: #{tpu_custom_call.1} parent=11 // pred_fallthru
          _
        // Predicated region
        $region17: #{tpu_custom_call.1} parent=11 // pred_check
          %p150 = pneg %p85
        $region18: #{tpu_custom_call.1} parent=11 // pred_check_branch
          %152 = sbr.rel (%p150) target = $region20
        $region19: #{tpu_custom_call.1} parent=11 // pred_region
          _
        $region20: #{tpu_custom_call.1} parent=11 // pred_fallthru
          _
        // Predicated region
        $region21: #{tpu_custom_call.1} parent=11 // pred_check
          %p153 = pneg %p106
        $region22: #{tpu_custom_call.1} parent=11 // pred_check_branch
          %155 = sbr.rel (%p153) target = $region24
        $region23: #{tpu_custom_call.1} parent=11 // pred_region
          %s157 = ssub.s32 16384, 16384
          %158 = vsyncadd [#allocation6], %s157
          %s159 = sshll.u32 [#allocation5], 4
          %s160 = int_to_ptr.vmem [resolvable:$true] %s159
          %165 = dma.hbm_to_vmem [thread:$0]  %s3, 16384, %s160, [#allocation6], 256, 256, 16
        $region24: #{tpu_custom_call.1} parent=11 // pred_fallthru
          _
      $region12: #{tpu_custom_call.1} parent=5 // pred_fallthru
        _
      %p166 = scmp.lt.s32.totalorder %s17, 2
      // Predicated region
      $region25: #{tpu_custom_call.1} parent=5 // pred_check
        %p167 = pneg %p166
      $region26: #{tpu_custom_call.1} parent=5 // pred_check_branch
        %169 = sbr.rel (%p167) target = $region28
      $region27: #{tpu_custom_call.1} parent=5 // pred_region
        // Predicated region
        $region29: #{tpu_custom_call.1} parent=27 // pred_check
          %p170 = pneg %p37
        $region30: #{tpu_custom_call.1} parent=27 // pred_check_branch
          %172 = sbr.rel (%p170) target = $region32
        $region31: #{tpu_custom_call.1} parent=27 // pred_region
          %s173 = sand.u32 %s27, 1
          %s174 = scalar_lea.sflag [#allocation3], %s173
          %s175 = sand.u32 %s27, 1
          %s176 = smul.addr %s175, 256
          %s177 = scalar_lea.vmem [#allocation2], %s176
          %s178 = smul.u32 4, %s17
          %s180 = ssub.s32 4096, 4096
          %181 = vsyncadd %s174, %s180
          %s182 = smul.addr %s178, 8
          %s183 = smul.addr %s182, 128
          %s184 = scalar_lea.hbm %s0, %s183
          %s185 = sshll.u32 %s177, 4
          %s186 = int_to_ptr.vmem [resolvable:$true] %s185
          %191 = dma.hbm_to_vmem [thread:$0]  %s184, 4096, %s186, %s174, 256, 256, 16
        $region32: #{tpu_custom_call.1} parent=27 // pred_fallthru
          _
      $region28: #{tpu_custom_call.1} parent=5 // pred_fallthru
        _
      %p192 = scmp.le.s32.totalorder 1, %s17
      %p193 = scmp.lt.s32.totalorder %s17, 3
      %p194 = pnand %p192, %p193
      %p195 = pneg %p194
      // Predicated region
      $region33: #{tpu_custom_call.1} parent=5 // pred_check
        _
      $region34: #{tpu_custom_call.1} parent=5 // pred_check_branch
        %197 = sbr.rel (%p194) target = $region36
      $region35: #{tpu_custom_call.1} parent=5 // pred_region
        %s198 = ssub.s32 %s17, 1
        %s199 = sand.u32 %s30, 1
        %s200 = scalar_lea.sflag [#allocation3], %s199
        %s201 = sand.u32 %s30, 1
        %s202 = smul.addr %s201, 256
        %s203 = scalar_lea.vmem [#allocation2], %s202
        // Predicated region
        $region37: #{tpu_custom_call.1} parent=35 // pred_check
          %p204 = pneg %p43
        $region38: #{tpu_custom_call.1} parent=35 // pred_check_branch
          %206 = sbr.rel (%p204) target = $region40
        $region39: #{tpu_custom_call.1} parent=35 // pred_region
          %207 = dma.done %s200, 4096
        $region40: #{tpu_custom_call.1} parent=35 // pred_fallthru
          _
        // Predicated region
        $region41: #{tpu_custom_call.1} parent=35 // pred_check
          %p208 = pneg %p106
        $region42: #{tpu_custom_call.1} parent=35 // pred_check_branch
          %210 = sbr.rel (%p208) target = $region44
        $region43: #{tpu_custom_call.1} parent=35 // pred_region
          %211 = dma.done [#allocation6], 16384
        $region44: #{tpu_custom_call.1} parent=35 // pred_fallthru
          _
        %s212 = sand.u32 %s30, 1
        %s213 = scalar_lea.sflag [#allocation3], %s212
        %s214 = sand.u32 %s30, 1
        %s215 = smul.addr %s214, 256
        %s216 = scalar_lea.vmem [#allocation2], %s215
        %p217 = pneg %p43
        %p218 = pneg %p40
        %p219 = pneg %p64
        %p220 = pneg %p61
        %p221 = pneg %p85
        %p222 = pneg %p82
        %p223 = pneg %p106
        %p224 = pneg %p103
        %p225 = pneg %p132
        %p226 = pneg %p129
        %s227 = sand.u32 %s119, 1
        %s228 = scalar_lea.sflag [#allocation4], %s227
        %s229 = sand.u32 %s119, 1
        %s230 = smul.addr %s229, 256
        %s231 = scalar_lea.vmem [#allocation7], %s230
        %s232 = smul.u32 4, %s22
        %s233 = smul.u32 4, %s22
        %v234 = vld [vmem:[%s203] sm:$0xff]
        %v235 = vld [vmem:[%s203 + $0x8] sm:$0xff]
        %v236 = vld [vmem:[%s203 + $0x10] sm:$0xff]
        %v237 = vld [vmem:[%s203 + $0x18] sm:$0xff]
        %v238 = vld [vmem:[%s203 + $0x20] sm:$0xff]
        %v239 = vld [vmem:[%s203 + $0x28] sm:$0xff]
        %v240 = vld [vmem:[%s203 + $0x30] sm:$0xff]
        %v241 = vld [vmem:[%s203 + $0x38] sm:$0xff]
        %v242 = vld [vmem:[%s203 + $0x40] sm:$0xff]
        %v243 = vld [vmem:[%s203 + $0x48] sm:$0xff]
        %v244 = vld [vmem:[%s203 + $0x50] sm:$0xff]
        %v245 = vld [vmem:[%s203 + $0x58] sm:$0xff]
        %v246 = vld [vmem:[%s203 + $0x60] sm:$0xff]
        %v247 = vld [vmem:[%s203 + $0x68] sm:$0xff]
        %v248 = vld [vmem:[%s203 + $0x70] sm:$0xff]
        %v249 = vld [vmem:[%s203 + $0x78] sm:$0xff]
        %v250 = vld [vmem:[%s203 + $0x80] sm:$0xff]
        %v251 = vld [vmem:[%s203 + $0x88] sm:$0xff]
        %v252 = vld [vmem:[%s203 + $0x90] sm:$0xff]
        %v253 = vld [vmem:[%s203 + $0x98] sm:$0xff]
        %v254 = vld [vmem:[%s203 + $0xa0] sm:$0xff]
        %v255 = vld [vmem:[%s203 + $0xa8] sm:$0xff]
        %v256 = vld [vmem:[%s203 + $0xb0] sm:$0xff]
        %v257 = vld [vmem:[%s203 + $0xb8] sm:$0xff]
        %v258 = vld [vmem:[%s203 + $0xc0] sm:$0xff]
        %v259 = vld [vmem:[%s203 + $0xc8] sm:$0xff]
        %v260 = vld [vmem:[%s203 + $0xd0] sm:$0xff]
        %v261 = vld [vmem:[%s203 + $0xd8] sm:$0xff]
        %v262 = vld [vmem:[%s203 + $0xe0] sm:$0xff]
        %v263 = vld [vmem:[%s203 + $0xe8] sm:$0xff]
        %v264 = vld [vmem:[%s203 + $0xf0] sm:$0xff]
        %v265 = vld [vmem:[%s203 + $0xf8] sm:$0xff]
        %v266 = vadd.f32 %v234, %v235
        %267 = vadd.xlane.f32.xlu0 %v266
        %v268 = vpop.xlane.xlu0 %267
        %v269 = vadd.f32 %v236, %v237
        %270 = vadd.xlane.f32.xlu0 %v269
        %v271 = vpop.xlane.xlu0 %270
        %v272 = vadd.f32 %v238, %v239
        %273 = vadd.xlane.f32.xlu0 %v272
        %v274 = vpop.xlane.xlu0 %273
        %v275 = vadd.f32 %v240, %v241
        %276 = vadd.xlane.f32.xlu0 %v275
        %v277 = vpop.xlane.xlu0 %276
        %v278 = vadd.f32 %v242, %v243
        %279 = vadd.xlane.f32.xlu0 %v278
        %v280 = vpop.xlane.xlu0 %279
        %v281 = vadd.f32 %v244, %v245
        %282 = vadd.xlane.f32.xlu0 %v281
        %v283 = vpop.xlane.xlu0 %282
        %v284 = vadd.f32 %v246, %v247
        %285 = vadd.xlane.f32.xlu0 %v284
        %v286 = vpop.xlane.xlu0 %285
        %v287 = vadd.f32 %v248, %v249
        %288 = vadd.xlane.f32.xlu0 %v287
        %v289 = vpop.xlane.xlu0 %288
        %v290 = vadd.f32 %v250, %v251
        %291 = vadd.xlane.f32.xlu0 %v290
        %v292 = vpop.xlane.xlu0 %291
        %v293 = vadd.f32 %v252, %v253
        %294 = vadd.xlane.f32.xlu0 %v293
        %v295 = vpop.xlane.xlu0 %294
        %v296 = vadd.f32 %v254, %v255
        %297 = vadd.xlane.f32.xlu0 %v296
        %v298 = vpop.xlane.xlu0 %297
        %v299 = vadd.f32 %v256, %v257
        %300 = vadd.xlane.f32.xlu0 %v299
        %v301 = vpop.xlane.xlu0 %300
        %v302 = vadd.f32 %v258, %v259
        %303 = vadd.xlane.f32.xlu0 %v302
        %v304 = vpop.xlane.xlu0 %303
        %v305 = vadd.f32 %v260, %v261
        %306 = vadd.xlane.f32.xlu0 %v305
        %v307 = vpop.xlane.xlu0 %306
        %v308 = vadd.f32 %v262, %v263
        %309 = vadd.xlane.f32.xlu0 %v308
        %v310 = vpop.xlane.xlu0 %309
        %v311 = vadd.f32 %v264, %v265
        %312 = vadd.xlane.f32.xlu0 %v311
        %v313 = vpop.xlane.xlu0 %312
        %v314 = vrcp.pop 256.0
        %v315 = vmul.f32 %v268, %v314
        %v316 = vmul.f32 %v271, %v314
        %v317 = vmul.f32 %v274, %v314
        %v318 = vmul.f32 %v277, %v314
        %v319 = vmul.f32 %v280, %v314
        %v320 = vmul.f32 %v283, %v314
        %v321 = vmul.f32 %v286, %v314
        %v322 = vmul.f32 %v289, %v314
        %v323 = vmul.f32 %v292, %v314
        %v324 = vmul.f32 %v295, %v314
        %v325 = vmul.f32 %v298, %v314
        %v326 = vmul.f32 %v301, %v314
        %v327 = vmul.f32 %v304, %v314
        %v328 = vmul.f32 %v307, %v314
        %v329 = vmul.f32 %v310, %v314
        %v330 = vmul.f32 %v313, %v314
        %v331 = vmax.f32 %v234, %v235
        %332 = vmax.xlane.f32.xlu0 %v331
        %v333 = vpop.xlane.xlu0 %332
        %v334 = vmax.f32 %v236, %v237
        %335 = vmax.xlane.f32.xlu0 %v334
        %v336 = vpop.xlane.xlu0 %335
        %v337 = vmax.f32 %v238, %v239
        %338 = vmax.xlane.f32.xlu0 %v337
        %v339 = vpop.xlane.xlu0 %338
        %v340 = vmax.f32 %v240, %v241
        %341 = vmax.xlane.f32.xlu0 %v340
        %v342 = vpop.xlane.xlu0 %341
        %v343 = vmax.f32 %v242, %v243
        %344 = vmax.xlane.f32.xlu0 %v343
        %v345 = vpop.xlane.xlu0 %344
        %v346 = vmax.f32 %v244, %v245
        %347 = vmax.xlane.f32.xlu0 %v346
        %v348 = vpop.xlane.xlu0 %347
        %v349 = vmax.f32 %v246, %v247
        %350 = vmax.xlane.f32.xlu0 %v349
        %v351 = vpop.xlane.xlu0 %350
        %v352 = vmax.f32 %v248, %v249
        %353 = vmax.xlane.f32.xlu0 %v352
        %v354 = vpop.xlane.xlu0 %353
        %v355 = vmax.f32 %v250, %v251
        %356 = vmax.xlane.f32.xlu0 %v355
        %v357 = vpop.xlane.xlu0 %356
        %v358 = vmax.f32 %v252, %v253
        %359 = vmax.xlane.f32.xlu0 %v358
        %v360 = vpop.xlane.xlu0 %359
        %v361 = vmax.f32 %v254, %v255
        %362 = vmax.xlane.f32.xlu0 %v361
        %v363 = vpop.xlane.xlu0 %362
        %v364 = vmax.f32 %v256, %v257
        %365 = vmax.xlane.f32.xlu0 %v364
        %v366 = vpop.xlane.xlu0 %365
        %v367 = vmax.f32 %v258, %v259
        %368 = vmax.xlane.f32.xlu0 %v367
        %v369 = vpop.xlane.xlu0 %368
        %v370 = vmax.f32 %v260, %v261
        %371 = vmax.xlane.f32.xlu0 %v370
        %v372 = vpop.xlane.xlu0 %371
        %v373 = vmax.f32 %v262, %v263
        %374 = vmax.xlane.f32.xlu0 %v373
        %v375 = vpop.xlane.xlu0 %374
        %v376 = vmax.f32 %v264, %v265
        %377 = vmax.xlane.f32.xlu0 %v376
        %v378 = vpop.xlane.xlu0 %377
        %v395 = vlaneseq
        %v396 = vand.u32 %v395, 127
        %v397 = vlaneseq
        %v398 = vshrl.u32 %v397, 7
        %v399 = vsub.s32 %v396, %v398
        %v400 = vrot.slane %v315, %v399
        %v401 = vadd.s32 %v396, 4294967288
        %v402 = vlaneseq
        %v403 = vshrl.u32 %v402, 7
        %v404 = vsub.s32 %v401, %v403
        %v405 = vrot.slane %v316, %v404
        %vm406 = vcmask 130112
        %v407 = vsel %vm406, %v405, %v400
        %v408 = vadd.s32 %v396, 4294967280
        %v409 = vlaneseq
        %v410 = vshrl.u32 %v409, 7
        %v411 = vsub.s32 %v408, %v410
        %v412 = vrot.slane %v317, %v411
        %vm413 = vcmask 195712
        %v414 = vsel %vm413, %v412, %v407
        %v415 = vadd.s32 %v396, 4294967272
        %v416 = vlaneseq
        %v417 = vshrl.u32 %v416, 7
        %v418 = vsub.s32 %v415, %v417
        %v419 = vrot.slane %v318, %v418
        %vm420 = vcmask 261312
        %v421 = vsel %vm420, %v419, %v414
        %v422 = vlaneseq
        %v423 = vshrl.u32 %v422, 7
        %v424 = vsub.s32 %v396, %v423
        %v425 = vrot.slane %v319, %v424
        %v426 = vlaneseq
        %v427 = vshrl.u32 %v426, 7
        %v428 = vsub.s32 %v401, %v427
        %v429 = vrot.slane %v320, %v428
        %v430 = vsel %vm406, %v429, %v425
        %v431 = vlaneseq
        %v432 = vshrl.u32 %v431, 7
        %v433 = vsub.s32 %v408, %v432
        %v434 = vrot.slane %v321, %v433
        %v435 = vsel %vm413, %v434, %v430
        %v436 = vlaneseq
        %v437 = vshrl.u32 %v436, 7
        %v438 = vsub.s32 %v415, %v437
        %v439 = vrot.slane %v322, %v438
        %v440 = vsel %vm420, %v439, %v435
        %v441 = vlaneseq
        %v442 = vshrl.u32 %v441, 7
        %v443 = vsub.s32 %v396, %v442
        %v444 = vrot.slane %v323, %v443
        %v445 = vlaneseq
        %v446 = vshrl.u32 %v445, 7
        %v447 = vsub.s32 %v401, %v446
        %v448 = vrot.slane %v324, %v447
        %v449 = vsel %vm406, %v448, %v444
        %v450 = vlaneseq
        %v451 = vshrl.u32 %v450, 7
        %v452 = vsub.s32 %v408, %v451
        %v453 = vrot.slane %v325, %v452
        %v454 = vsel %vm413, %v453, %v449
        %v455 = vlaneseq
        %v456 = vshrl.u32 %v455, 7
        %v457 = vsub.s32 %v415, %v456
        %v458 = vrot.slane %v326, %v457
        %v459 = vsel %vm420, %v458, %v454
        %v460 = vlaneseq
        %v461 = vshrl.u32 %v460, 7
        %v462 = vsub.s32 %v396, %v461
        %v463 = vrot.slane %v327, %v462
        %v464 = vlaneseq
        %v465 = vshrl.u32 %v464, 7
        %v466 = vsub.s32 %v401, %v465
        %v467 = vrot.slane %v328, %v466
        %v468 = vsel %vm406, %v467, %v463
        %v469 = vlaneseq
        %v470 = vshrl.u32 %v469, 7
        %v471 = vsub.s32 %v408, %v470
        %v472 = vrot.slane %v329, %v471
        %v473 = vsel %vm413, %v472, %v468
        %v474 = vlaneseq
        %v475 = vshrl.u32 %v474, 7
        %v476 = vsub.s32 %v415, %v475
        %v477 = vrot.slane %v330, %v476
        %v478 = vsel %vm420, %v477, %v473
        %vm479 = vcmask 1041409
        %v480 = vsel %vm479, %v440, %v421
        %vm481 = vcmask 1042434
        %v482 = vsel %vm481, %v459, %v480
        %vm483 = vcmask 1043459
        %v484 = vsel %vm483, %v478, %v482
        %v502 = vlaneseq
        %v503 = vshrl.u32 %v502, 7
        %v504 = vsub.s32 %v396, %v503
        %v505 = vrot.slane %v333, %v504
        %v506 = vlaneseq
        %v507 = vshrl.u32 %v506, 7
        %v508 = vsub.s32 %v401, %v507
        %v509 = vrot.slane %v336, %v508
        %v510 = vsel %vm406, %v509, %v505
        %v511 = vlaneseq
        %v512 = vshrl.u32 %v511, 7
        %v513 = vsub.s32 %v408, %v512
        %v514 = vrot.slane %v339, %v513
        %v515 = vsel %vm413, %v514, %v510
        %v516 = vlaneseq
        %v517 = vshrl.u32 %v516, 7
        %v518 = vsub.s32 %v415, %v517
        %v519 = vrot.slane %v342, %v518
        %v520 = vsel %vm420, %v519, %v515
        %v521 = vlaneseq
        %v522 = vshrl.u32 %v521, 7
        %v523 = vsub.s32 %v396, %v522
        %v524 = vrot.slane %v345, %v523
        %v525 = vlaneseq
        %v526 = vshrl.u32 %v525, 7
        %v527 = vsub.s32 %v401, %v526
        %v528 = vrot.slane %v348, %v527
        %v529 = vsel %vm406, %v528, %v524
        %v530 = vlaneseq
        %v531 = vshrl.u32 %v530, 7
        %v532 = vsub.s32 %v408, %v531
        %v533 = vrot.slane %v351, %v532
        %v534 = vsel %vm413, %v533, %v529
        %v535 = vlaneseq
        %v536 = vshrl.u32 %v535, 7
        %v537 = vsub.s32 %v415, %v536
        %v538 = vrot.slane %v354, %v537
        %v539 = vsel %vm420, %v538, %v534
        %v540 = vlaneseq
        %v541 = vshrl.u32 %v540, 7
        %v542 = vsub.s32 %v396, %v541
        %v543 = vrot.slane %v357, %v542
        %v544 = vlaneseq
        %v545 = vshrl.u32 %v544, 7
        %v546 = vsub.s32 %v401, %v545
        %v547 = vrot.slane %v360, %v546
        %v548 = vsel %vm406, %v547, %v543
        %v549 = vlaneseq
        %v550 = vshrl.u32 %v549, 7
        %v551 = vsub.s32 %v408, %v550
        %v552 = vrot.slane %v363, %v551
        %v553 = vsel %vm413, %v552, %v548
        %v554 = vlaneseq
        %v555 = vshrl.u32 %v554, 7
        %v556 = vsub.s32 %v415, %v555
        %v557 = vrot.slane %v366, %v556
        %v558 = vsel %vm420, %v557, %v553
        %v559 = vlaneseq
        %v560 = vshrl.u32 %v559, 7
        %v561 = vsub.s32 %v396, %v560
        %v562 = vrot.slane %v369, %v561
        %v563 = vlaneseq
        %v564 = vshrl.u32 %v563, 7
        %v565 = vsub.s32 %v401, %v564
        %v566 = vrot.slane %v372, %v565
        %v567 = vsel %vm406, %v566, %v562
        %v568 = vlaneseq
        %v569 = vshrl.u32 %v568, 7
        %v570 = vsub.s32 %v408, %v569
        %v571 = vrot.slane %v375, %v570
        %v572 = vsel %vm413, %v571, %v567
        %v573 = vlaneseq
        %v574 = vshrl.u32 %v573, 7
        %v575 = vsub.s32 %v415, %v574
        %v576 = vrot.slane %v378, %v575
        %v577 = vsel %vm420, %v576, %v572
        %vm578 = vcmask 1045509
        %v579 = vsel %vm578, %v539, %v520
        %vm580 = vcmask 1046534
        %v581 = vsel %vm580, %v558, %v579
        %vm582 = vcmask 1047559
        %v583 = vsel %vm582, %v577, %v581
        %vm585 = vcmask 1043456
        %v586 = vsel %vm585, %v484, %v583
        %v587 = vld [vmem:[%s1] sm:$0xff]
        %v588 = vld [vmem:[%s1 + $0x8] sm:$0xff]
        %v589 = vld [vmem:[%s1 + $0x10] sm:$0xff]
        %v590 = vld [vmem:[%s1 + $0x18] sm:$0xff]
        %vm591 = vcmask 261120
        %v593 = vsel %vm591, %v586, 0
        %595 = vmatprep.subr.mxu0 0.0
        %596 = vmatpush1.msra.mxu0 %v587
        %597 = vmatprep.subr.mxu0 0.0
        %598 = vmatpush1.msra.mxu0 %v588
        %599 = vmatprep.subr.mxu0 0.0
        %600 = vmatpush1.msra.mxu0 %v589
        %601 = vmatprep.subr.mxu0 0.0
        %602 = vmatpush1.msra.mxu0 %v590
        %603 = vmatprep.subr.mxu0 0.0
        %604 = vmatpush1.msra.mxu0 0.0
        %605 = vmatprep.subr.mxu0 0.0
        %606 = vmatpush1.msra.mxu0 0.0
        %607 = vmatprep.subr.mxu0 0.0
        %608 = vmatpush1.msra.mxu0 0.0
        %609 = vmatprep.subr.mxu0 0.0
        %610 = vmatpush1.msra.mxu0 0.0
        %611 = vmatprep.subr.mxu0 0.0
        %612 = vmatpush1.msra.mxu0 0.0
        %613 = vmatprep.subr.mxu0 0.0
        %614 = vmatpush1.msra.mxu0 0.0
        %615 = vmatprep.subr.mxu0 0.0
        %616 = vmatpush1.msra.mxu0 0.0
        %617 = vmatprep.subr.mxu0 0.0
        %618 = vmatpush1.msra.mxu0 0.0
        %619 = vmatprep.subr.mxu0 0.0
        %620 = vmatpush1.msra.mxu0 0.0
        %621 = vmatprep.subr.mxu0 0.0
        %622 = vmatpush1.msra.mxu0 0.0
        %623 = vmatprep.subr.mxu0 0.0
        %624 = vmatpush1.msra.mxu0 0.0
        %625 = vmatprep.subr.mxu0 0.0
        %626 = vmatpush1.msra.mxu0 0.0
        %627 = vmatprep.subr.mxu0 0.0
        %628 = vmatpush1.msra.mxu0 0.0
        %629 = vmatprep.subr.mxu0 0.0
        %630 = vmatpush1.msra.mxu0 0.0
        %631 = vmatprep.subr.mxu0 0.0
        %632 = vmatpush1.msra.mxu0 0.0
        %633 = vmatprep.subr.mxu0 0.0
        %634 = vmatpush1.msra.mxu0 0.0
        %635 = vmatprep.subr.mxu0 0.0
        %636 = vmatpush1.msra.mxu0 0.0
        %637 = vmatprep.subr.mxu0 0.0
        %638 = vmatpush1.msra.mxu0 0.0
        %639 = vmatprep.subr.mxu0 0.0
        %640 = vmatpush1.msra.mxu0 0.0
        %641 = vmatprep.subr.mxu0 0.0
        %642 = vmatpush1.msra.mxu0 0.0
        %643 = vmatprep.subr.mxu0 0.0
        %644 = vmatpush1.msra.mxu0 0.0
        %645 = vmatprep.subr.mxu0 0.0
        %646 = vmatpush1.msra.mxu0 0.0
        %647 = vmatprep.subr.mxu0 0.0
        %648 = vmatpush1.msra.mxu0 0.0
        %649 = vmatprep.subr.mxu0 0.0
        %650 = vmatpush1.msra.mxu0 0.0
        %651 = vmatprep.subr.mxu0 0.0
        %652 = vmatpush1.msra.mxu0 0.0
        %653 = vmatprep.subr.mxu0 0.0
        %654 = vmatpush1.msra.mxu0 0.0
        %655 = vmatprep.subr.mxu0 0.0
        %656 = vmatpush1.msra.mxu0 0.0
        %657 = vmatprep.subr.mxu0 0.0
        %658 = vmatpush1.msra.mxu0 0.0
        %659 = vmatprep.mubr.f32.mxu0 0.0
        %660 = vmatmul.mubr.f32.gmra.mrb[0].mxu0 %v593
        %v661 = vpop.f32.mrb[0].mxu0
        %v662 = vadd.f32 0.0, %v661
        %v663 = vpop.f32.mrb[0].mxu0
        %664 = vdwg.mxu0
        %v665 = vmax.f32 %v662, 0.0
        %v666 = vld [vmem:[%s2] sm:$0x3]
        %vm667 = vcmask 15360
        %v669 = vsel %vm667, %v665, 0
        %vm671 = vcmask 1041408
        %v673 = vsel %vm671, %v666, 0
        %675 = vmatprep.subr.mxu0 0.0
        %676 = vmatpush1.msra.mxu0 %v673
        %677 = vmatprep.subr.mxu0 0.0
        %678 = vmatpush1.msra.mxu0 0.0
        %679 = vmatprep.subr.mxu0 0.0
        %680 = vmatpush1.msra.mxu0 0.0
        %681 = vmatprep.subr.mxu0 0.0
        %682 = vmatpush1.msra.mxu0 0.0
        %683 = vmatprep.subr.mxu0 0.0
        %684 = vmatpush1.msra.mxu0 0.0
        %685 = vmatprep.subr.mxu0 0.0
        %686 = vmatpush1.msra.mxu0 0.0
        %687 = vmatprep.subr.mxu0 0.0
        %688 = vmatpush1.msra.mxu0 0.0
        %689 = vmatprep.subr.mxu0 0.0
        %690 = vmatpush1.msra.mxu0 0.0
        %691 = vmatprep.subr.mxu0 0.0
        %692 = vmatpush1.msra.mxu0 0.0
        %693 = vmatprep.subr.mxu0 0.0
        %694 = vmatpush1.msra.mxu0 0.0
        %695 = vmatprep.subr.mxu0 0.0
        %696 = vmatpush1.msra.mxu0 0.0
        %697 = vmatprep.subr.mxu0 0.0
        %698 = vmatpush1.msra.mxu0 0.0
        %699 = vmatprep.subr.mxu0 0.0
        %700 = vmatpush1.msra.mxu0 0.0
        %701 = vmatprep.subr.mxu0 0.0
        %702 = vmatpush1.msra.mxu0 0.0
        %703 = vmatprep.subr.mxu0 0.0
        %704 = vmatpush1.msra.mxu0 0.0
        %705 = vmatprep.subr.mxu0 0.0
        %706 = vmatpush1.msra.mxu0 0.0
        %707 = vmatprep.subr.mxu0 0.0
        %708 = vmatpush1.msra.mxu0 0.0
        %709 = vmatprep.subr.mxu0 0.0
        %710 = vmatpush1.msra.mxu0 0.0
        %711 = vmatprep.subr.mxu0 0.0
        %712 = vmatpush1.msra.mxu0 0.0
        %713 = vmatprep.subr.mxu0 0.0
        %714 = vmatpush1.msra.mxu0 0.0
        %715 = vmatprep.subr.mxu0 0.0
        %716 = vmatpush1.msra.mxu0 0.0
        %717 = vmatprep.subr.mxu0 0.0
        %718 = vmatpush1.msra.mxu0 0.0
        %719 = vmatprep.subr.mxu0 0.0
        %720 = vmatpush1.msra.mxu0 0.0
        %721 = vmatprep.subr.mxu0 0.0
        %722 = vmatpush1.msra.mxu0 0.0
        %723 = vmatprep.subr.mxu0 0.0
        %724 = vmatpush1.msra.mxu0 0.0
        %725 = vmatprep.subr.mxu0 0.0
        %726 = vmatpush1.msra.mxu0 0.0
        %727 = vmatprep.subr.mxu0 0.0
        %728 = vmatpush1.msra.mxu0 0.0
        %729 = vmatprep.subr.mxu0 0.0
        %730 = vmatpush1.msra.mxu0 0.0
        %731 = vmatprep.subr.mxu0 0.0
        %732 = vmatpush1.msra.mxu0 0.0
        %733 = vmatprep.subr.mxu0 0.0
        %734 = vmatpush1.msra.mxu0 0.0
        %735 = vmatprep.subr.mxu0 0.0
        %736 = vmatpush1.msra.mxu0 0.0
        %737 = vmatprep.subr.mxu0 0.0
        %738 = vmatpush1.msra.mxu0 0.0
        %739 = vmatprep.mubr.f32.mxu0 0.0
        %740 = vmatmul.mubr.f32.gmra.mrb[0].mxu0 %v669
        %v741 = vpop.f32.mrb[0].mxu0
        %v742 = vadd.f32 0.0, %v741
        %v743 = vpop.f32.mrb[0].mxu0
        %744 = vdwg.mxu0
        %v746 = vrot.slane %v742, 4
        %v748 = vadd.f32 %v742, %v746
        %v749 = vxor.u32 %v748, 2147483648
        %v750 = vmul.f32 %v749, 1.442695
        %v751 = vpow.pop %v750
        %v752 = vadd.f32 %v751, 1.0
        %v753 = vrcp.pop %v752
        %v754 = vmul.f32 1.0, %v753
        %v755 = vlaneseq
        %v756 = vshrl.u32 %v755, 7
        %v757 = vsub.s32 0, %v756
        %v758 = vrot.slane %v754, %v757
        %760 = vbcast.lane.b32.xlu0 %v758, 256
        %v761 = vpop.permute.xlu0 %760
        %s763 = sor.u32 256, 8
        %764 = vbcast.lane.b32.xlu0 %v758, %s763
        %v765 = vpop.permute.xlu0 %764
        %s767 = sor.u32 256, 16
        %768 = vbcast.lane.b32.xlu0 %v758, %s767
        %v769 = vpop.permute.xlu0 %768
        %s771 = sor.u32 256, 24
        %772 = vbcast.lane.b32.xlu0 %v758, %s771
        %v773 = vpop.permute.xlu0 %772
        %v774 = vlaneseq
        %v775 = vshrl.u32 %v774, 7
        %v776 = vsub.s32 1, %v775
        %v777 = vrot.slane %v754, %v776
        %779 = vbcast.lane.b32.xlu0 %v777, 256
        %v780 = vpop.permute.xlu0 %779
        %s782 = sor.u32 256, 8
        %783 = vbcast.lane.b32.xlu0 %v777, %s782
        %v784 = vpop.permute.xlu0 %783
        %s786 = sor.u32 256, 16
        %787 = vbcast.lane.b32.xlu0 %v777, %s786
        %v788 = vpop.permute.xlu0 %787
        %s790 = sor.u32 256, 24
        %791 = vbcast.lane.b32.xlu0 %v777, %s790
        %v792 = vpop.permute.xlu0 %791
        %v793 = vlaneseq
        %v794 = vshrl.u32 %v793, 7
        %v795 = vsub.s32 2, %v794
        %v796 = vrot.slane %v754, %v795
        %798 = vbcast.lane.b32.xlu0 %v796, 256
        %v799 = vpop.permute.xlu0 %798
        %s801 = sor.u32 256, 8
        %802 = vbcast.lane.b32.xlu0 %v796, %s801
        %v803 = vpop.permute.xlu0 %802
        %s805 = sor.u32 256, 16
        %806 = vbcast.lane.b32.xlu0 %v796, %s805
        %v807 = vpop.permute.xlu0 %806
        %s809 = sor.u32 256, 24
        %810 = vbcast.lane.b32.xlu0 %v796, %s809
        %v811 = vpop.permute.xlu0 %810
        %v812 = vlaneseq
        %v813 = vshrl.u32 %v812, 7
        %v814 = vsub.s32 3, %v813
        %v815 = vrot.slane %v754, %v814
        %817 = vbcast.lane.b32.xlu0 %v815, 256
        %v818 = vpop.permute.xlu0 %817
        %s820 = sor.u32 256, 8
        %821 = vbcast.lane.b32.xlu0 %v815, %s820
        %v822 = vpop.permute.xlu0 %821
        %s824 = sor.u32 256, 16
        %825 = vbcast.lane.b32.xlu0 %v815, %s824
        %v826 = vpop.permute.xlu0 %825
        %s828 = sor.u32 256, 24
        %829 = vbcast.lane.b32.xlu0 %v815, %s828
        %v830 = vpop.permute.xlu0 %829
        %v831 = vmul.f32 %v234, %v761
        %v832 = vmul.f32 %v235, %v761
        %v833 = vmul.f32 %v236, %v765
        %v834 = vmul.f32 %v237, %v765
        %v835 = vmul.f32 %v238, %v769
        %v836 = vmul.f32 %v239, %v769
        %v837 = vmul.f32 %v240, %v773
        %v838 = vmul.f32 %v241, %v773
        %v839 = vmul.f32 %v242, %v780
        %v840 = vmul.f32 %v243, %v780
        %v841 = vmul.f32 %v244, %v784
        %v842 = vmul.f32 %v245, %v784
        %v843 = vmul.f32 %v246, %v788
        %v844 = vmul.f32 %v247, %v788
        %v845 = vmul.f32 %v248, %v792
        %v846 = vmul.f32 %v249, %v792
        %v847 = vmul.f32 %v250, %v799
        %v848 = vmul.f32 %v251, %v799
        %v849 = vmul.f32 %v252, %v803
        %v850 = vmul.f32 %v253, %v803
        %v851 = vmul.f32 %v254, %v807
        %v852 = vmul.f32 %v255, %v807
        %v853 = vmul.f32 %v256, %v811
        %v854 = vmul.f32 %v257, %v811
        %v855 = vmul.f32 %v258, %v818
        %v856 = vmul.f32 %v259, %v818
        %v857 = vmul.f32 %v260, %v822
        %v858 = vmul.f32 %v261, %v822
        %v859 = vmul.f32 %v262, %v826
        %v860 = vmul.f32 %v263, %v826
        %v861 = vmul.f32 %v264, %v830
        %v862 = vmul.f32 %v265, %v830
        %v863 = vadd.f32 %v831, %v833
        %v864 = vadd.f32 %v863, %v835
        %v865 = vadd.f32 %v864, %v837
        %v866 = vrot.slane %v865, 4
        %v867 = vadd.f32 %v865, %v866
        %v868 = vrot.slane %v867, 2
        %v869 = vadd.f32 %v867, %v868
        %v870 = vrot.slane %v869, 1
        %v871 = vadd.f32 %v869, %v870
        %v872 = vadd.f32 %v832, %v834
        %v873 = vadd.f32 %v872, %v836
        %v874 = vadd.f32 %v873, %v838
        %v875 = vrot.slane %v874, 4
        %v876 = vadd.f32 %v874, %v875
        %v877 = vrot.slane %v876, 2
        %v878 = vadd.f32 %v876, %v877
        %v879 = vrot.slane %v878, 1
        %v880 = vadd.f32 %v878, %v879
        %v881 = vadd.f32 %v839, %v841
        %v882 = vadd.f32 %v881, %v843
        %v883 = vadd.f32 %v882, %v845
        %v884 = vrot.slane %v883, 4
        %v885 = vadd.f32 %v883, %v884
        %v886 = vrot.slane %v885, 2
        %v887 = vadd.f32 %v885, %v886
        %v888 = vrot.slane %v887, 1
        %v889 = vadd.f32 %v887, %v888
        %v890 = vadd.f32 %v840, %v842
        %v891 = vadd.f32 %v890, %v844
        %v892 = vadd.f32 %v891, %v846
        %v893 = vrot.slane %v892, 4
        %v894 = vadd.f32 %v892, %v893
        %v895 = vrot.slane %v894, 2
        %v896 = vadd.f32 %v894, %v895
        %v897 = vrot.slane %v896, 1
        %v898 = vadd.f32 %v896, %v897
        %v899 = vadd.f32 %v847, %v849
        %v900 = vadd.f32 %v899, %v851
        %v901 = vadd.f32 %v900, %v853
        %v902 = vrot.slane %v901, 4
        %v903 = vadd.f32 %v901, %v902
        %v904 = vrot.slane %v903, 2
        %v905 = vadd.f32 %v903, %v904
        %v906 = vrot.slane %v905, 1
        %v907 = vadd.f32 %v905, %v906
        %v908 = vadd.f32 %v848, %v850
        %v909 = vadd.f32 %v908, %v852
        %v910 = vadd.f32 %v909, %v854
        %v911 = vrot.slane %v910, 4
        %v912 = vadd.f32 %v910, %v911
        %v913 = vrot.slane %v912, 2
        %v914 = vadd.f32 %v912, %v913
        %v915 = vrot.slane %v914, 1
        %v916 = vadd.f32 %v914, %v915
        %v917 = vadd.f32 %v855, %v857
        %v918 = vadd.f32 %v917, %v859
        %v919 = vadd.f32 %v918, %v861
        %v920 = vrot.slane %v919, 4
        %v921 = vadd.f32 %v919, %v920
        %v922 = vrot.slane %v921, 2
        %v923 = vadd.f32 %v921, %v922
        %v924 = vrot.slane %v923, 1
        %v925 = vadd.f32 %v923, %v924
        %v926 = vadd.f32 %v856, %v858
        %v927 = vadd.f32 %v926, %v860
        %v928 = vadd.f32 %v927, %v862
        %v929 = vrot.slane %v928, 4
        %v930 = vadd.f32 %v928, %v929
        %v931 = vrot.slane %v930, 2
        %v932 = vadd.f32 %v930, %v931
        %v933 = vrot.slane %v932, 1
        %v934 = vadd.f32 %v932, %v933
        %v935 = vrcp.pop 32.0
        %v936 = vmul.f32 %v871, %v935
        %v937 = vmul.f32 %v880, %v935
        %v938 = vmul.f32 %v889, %v935
        %v939 = vmul.f32 %v898, %v935
        %v940 = vmul.f32 %v907, %v935
        %v941 = vmul.f32 %v916, %v935
        %v942 = vmul.f32 %v925, %v935
        %v943 = vmul.f32 %v934, %v935
        %v944 = vmax.f32 %v831, %v833
        %v945 = vmax.f32 %v944, %v835
        %v946 = vmax.f32 %v945, %v837
        %v947 = vrot.slane %v946, 4
        %v948 = vmax.f32 %v946, %v947
        %v949 = vrot.slane %v948, 2
        %v950 = vmax.f32 %v948, %v949
        %v951 = vrot.slane %v950, 1
        %v952 = vmax.f32 %v950, %v951
        %v953 = vmax.f32 %v832, %v834
        %v954 = vmax.f32 %v953, %v836
        %v955 = vmax.f32 %v954, %v838
        %v956 = vrot.slane %v955, 4
        %v957 = vmax.f32 %v955, %v956
        %v958 = vrot.slane %v957, 2
        %v959 = vmax.f32 %v957, %v958
        %v960 = vrot.slane %v959, 1
        %v961 = vmax.f32 %v959, %v960
        %v962 = vmax.f32 %v839, %v841
        %v963 = vmax.f32 %v962, %v843
        %v964 = vmax.f32 %v963, %v845
        %v965 = vrot.slane %v964, 4
        %v966 = vmax.f32 %v964, %v965
        %v967 = vrot.slane %v966, 2
        %v968 = vmax.f32 %v966, %v967
        %v969 = vrot.slane %v968, 1
        %v970 = vmax.f32 %v968, %v969
        %v971 = vmax.f32 %v840, %v842
        %v972 = vmax.f32 %v971, %v844
        %v973 = vmax.f32 %v972, %v846
        %v974 = vrot.slane %v973, 4
        %v975 = vmax.f32 %v973, %v974
        %v976 = vrot.slane %v975, 2
        %v977 = vmax.f32 %v975, %v976
        %v978 = vrot.slane %v977, 1
        %v979 = vmax.f32 %v977, %v978
        %v980 = vmax.f32 %v847, %v849
        %v981 = vmax.f32 %v980, %v851
        %v982 = vmax.f32 %v981, %v853
        %v983 = vrot.slane %v982, 4
        %v984 = vmax.f32 %v982, %v983
        %v985 = vrot.slane %v984, 2
        %v986 = vmax.f32 %v984, %v985
        %v987 = vrot.slane %v986, 1
        %v988 = vmax.f32 %v986, %v987
        %v989 = vmax.f32 %v848, %v850
        %v990 = vmax.f32 %v989, %v852
        %v991 = vmax.f32 %v990, %v854
        %v992 = vrot.slane %v991, 4
        %v993 = vmax.f32 %v991, %v992
        %v994 = vrot.slane %v993, 2
        %v995 = vmax.f32 %v993, %v994
        %v996 = vrot.slane %v995, 1
        %v997 = vmax.f32 %v995, %v996
        %v998 = vmax.f32 %v855, %v857
        %v999 = vmax.f32 %v998, %v859
        %v1000 = vmax.f32 %v999, %v861
        %v1001 = vrot.slane %v1000, 4
        %v1002 = vmax.f32 %v1000, %v1001
        %v1003 = vrot.slane %v1002, 2
        %v1004 = vmax.f32 %v1002, %v1003
        %v1005 = vrot.slane %v1004, 1
        %v1006 = vmax.f32 %v1004, %v1005
        %v1007 = vmax.f32 %v856, %v858
        %v1008 = vmax.f32 %v1007, %v860
        %v1009 = vmax.f32 %v1008, %v862
        %v1010 = vrot.slane %v1009, 4
        %v1011 = vmax.f32 %v1009, %v1010
        %v1012 = vrot.slane %v1011, 2
        %v1013 = vmax.f32 %v1011, %v1012
        %v1014 = vrot.slane %v1013, 1
        %v1015 = vmax.f32 %v1013, %v1014
        %v1024 = vsel %vm479, %v938, %v936
        %v1025 = vsel %vm481, %v940, %v1024
        %v1026 = vsel %vm483, %v942, %v1025
        %v1027 = vsel %vm479, %v939, %v937
        %v1028 = vsel %vm481, %v941, %v1027
        %v1029 = vsel %vm483, %v943, %v1028
        %v1040 = vsel %vm479, %v970, %v952
        %v1041 = vsel %vm481, %v988, %v1040
        %v1042 = vsel %vm483, %v1006, %v1041
        %v1043 = vsel %vm479, %v979, %v961
        %v1044 = vsel %vm481, %v997, %v1043
        %v1045 = vsel %vm483, %v1015, %v1044
        %v1048 = vld [vmem:[#allocation5] sm:$0xff]
        %v1049 = vld [vmem:[#allocation5 + $0x8] sm:$0xff]
        %v1050 = vld [vmem:[#allocation5 + $0x10] sm:$0xff]
        %v1051 = vld [vmem:[#allocation5 + $0x18] sm:$0xff]
        %v1052 = vld [vmem:[#allocation5 + $0x20] sm:$0xff]
        %v1053 = vld [vmem:[#allocation5 + $0x28] sm:$0xff]
        %v1054 = vld [vmem:[#allocation5 + $0x30] sm:$0xff]
        %v1055 = vld [vmem:[#allocation5 + $0x38] sm:$0xff]
        %v1056 = vld [vmem:[#allocation5 + $0x40] sm:$0xff]
        %v1057 = vld [vmem:[#allocation5 + $0x48] sm:$0xff]
        %v1058 = vld [vmem:[#allocation5 + $0x50] sm:$0xff]
        %v1059 = vld [vmem:[#allocation5 + $0x58] sm:$0xff]
        %v1060 = vld [vmem:[#allocation5 + $0x60] sm:$0xff]
        %v1061 = vld [vmem:[#allocation5 + $0x68] sm:$0xff]
        %v1062 = vld [vmem:[#allocation5 + $0x70] sm:$0xff]
        %v1063 = vld [vmem:[#allocation5 + $0x78] sm:$0xff]
        %v1064 = vld [vmem:[#allocation5 + $0x80] sm:$0xff]
        %v1065 = vld [vmem:[#allocation5 + $0x88] sm:$0xff]
        %v1066 = vld [vmem:[#allocation5 + $0x90] sm:$0xff]
        %v1067 = vld [vmem:[#allocation5 + $0x98] sm:$0xff]
        %v1068 = vld [vmem:[#allocation5 + $0xa0] sm:$0xff]
        %v1069 = vld [vmem:[#allocation5 + $0xa8] sm:$0xff]
        %v1070 = vld [vmem:[#allocation5 + $0xb0] sm:$0xff]
        %v1071 = vld [vmem:[#allocation5 + $0xb8] sm:$0xff]
        %v1072 = vld [vmem:[#allocation5 + $0xc0] sm:$0xff]
        %v1073 = vld [vmem:[#allocation5 + $0xc8] sm:$0xff]
        %v1074 = vld [vmem:[#allocation5 + $0xd0] sm:$0xff]
        %v1075 = vld [vmem:[#allocation5 + $0xd8] sm:$0xff]
        %v1076 = vld [vmem:[#allocation5 + $0xe0] sm:$0xff]
        %v1077 = vld [vmem:[#allocation5 + $0xe8] sm:$0xff]
        %v1078 = vld [vmem:[#allocation5 + $0xf0] sm:$0xff]
        %v1079 = vld [vmem:[#allocation5 + $0xf8] sm:$0xff]
        %v1080 = vld [vmem:[#allocation5 + $0x100] sm:$0xff]
        %v1081 = vld [vmem:[#allocation5 + $0x108] sm:$0xff]
        %v1082 = vld [vmem:[#allocation5 + $0x110] sm:$0xff]
        %v1083 = vld [vmem:[#allocation5 + $0x118] sm:$0xff]
        %v1084 = vld [vmem:[#allocation5 + $0x120] sm:$0xff]
        %v1085 = vld [vmem:[#allocation5 + $0x128] sm:$0xff]
        %v1086 = vld [vmem:[#allocation5 + $0x130] sm:$0xff]
        %v1087 = vld [vmem:[#allocation5 + $0x138] sm:$0xff]
        %v1088 = vld [vmem:[#allocation5 + $0x140] sm:$0xff]
        %v1089 = vld [vmem:[#allocation5 + $0x148] sm:$0xff]
        %v1090 = vld [vmem:[#allocation5 + $0x150] sm:$0xff]
        %v1091 = vld [vmem:[#allocation5 + $0x158] sm:$0xff]
        %v1092 = vld [vmem:[#allocation5 + $0x160] sm:$0xff]
        %v1093 = vld [vmem:[#allocation5 + $0x168] sm:$0xff]
        %v1094 = vld [vmem:[#allocation5 + $0x170] sm:$0xff]
        %v1095 = vld [vmem:[#allocation5 + $0x178] sm:$0xff]
        %v1096 = vld [vmem:[#allocation5 + $0x180] sm:$0xff]
        %v1097 = vld [vmem:[#allocation5 + $0x188] sm:$0xff]
        %v1098 = vld [vmem:[#allocation5 + $0x190] sm:$0xff]
        %v1099 = vld [vmem:[#allocation5 + $0x198] sm:$0xff]
        %v1100 = vld [vmem:[#allocation5 + $0x1a0] sm:$0xff]
        %v1101 = vld [vmem:[#allocation5 + $0x1a8] sm:$0xff]
        %v1102 = vld [vmem:[#allocation5 + $0x1b0] sm:$0xff]
        %v1103 = vld [vmem:[#allocation5 + $0x1b8] sm:$0xff]
        %v1104 = vld [vmem:[#allocation5 + $0x1c0] sm:$0xff]
        %v1105 = vld [vmem:[#allocation5 + $0x1c8] sm:$0xff]
        %v1106 = vld [vmem:[#allocation5 + $0x1d0] sm:$0xff]
        %v1107 = vld [vmem:[#allocation5 + $0x1d8] sm:$0xff]
        %v1108 = vld [vmem:[#allocation5 + $0x1e0] sm:$0xff]
        %v1109 = vld [vmem:[#allocation5 + $0x1e8] sm:$0xff]
        %v1110 = vld [vmem:[#allocation5 + $0x1f0] sm:$0xff]
        %v1111 = vld [vmem:[#allocation5 + $0x1f8] sm:$0xff]
        %v1112 = vld [vmem:[#allocation5 + $0x200] sm:$0xff]
        %v1113 = vld [vmem:[#allocation5 + $0x208] sm:$0xff]
        %v1114 = vld [vmem:[#allocation5 + $0x210] sm:$0xff]
        %v1115 = vld [vmem:[#allocation5 + $0x218] sm:$0xff]
        %v1116 = vld [vmem:[#allocation5 + $0x220] sm:$0xff]
        %v1117 = vld [vmem:[#allocation5 + $0x228] sm:$0xff]
        %v1118 = vld [vmem:[#allocation5 + $0x230] sm:$0xff]
        %v1119 = vld [vmem:[#allocation5 + $0x238] sm:$0xff]
        %v1120 = vld [vmem:[#allocation5 + $0x240] sm:$0xff]
        %v1121 = vld [vmem:[#allocation5 + $0x248] sm:$0xff]
        %v1122 = vld [vmem:[#allocation5 + $0x250] sm:$0xff]
        %v1123 = vld [vmem:[#allocation5 + $0x258] sm:$0xff]
        %v1124 = vld [vmem:[#allocation5 + $0x260] sm:$0xff]
        %v1125 = vld [vmem:[#allocation5 + $0x268] sm:$0xff]
        %v1126 = vld [vmem:[#allocation5 + $0x270] sm:$0xff]
        %v1127 = vld [vmem:[#allocation5 + $0x278] sm:$0xff]
        %v1128 = vld [vmem:[#allocation5 + $0x280] sm:$0xff]
        %v1129 = vld [vmem:[#allocation5 + $0x288] sm:$0xff]
        %v1130 = vld [vmem:[#allocation5 + $0x290] sm:$0xff]
        %v1131 = vld [vmem:[#allocation5 + $0x298] sm:$0xff]
        %v1132 = vld [vmem:[#allocation5 + $0x2a0] sm:$0xff]
        %v1133 = vld [vmem:[#allocation5 + $0x2a8] sm:$0xff]
        %v1134 = vld [vmem:[#allocation5 + $0x2b0] sm:$0xff]
        %v1135 = vld [vmem:[#allocation5 + $0x2b8] sm:$0xff]
        %v1136 = vld [vmem:[#allocation5 + $0x2c0] sm:$0xff]
        %v1137 = vld [vmem:[#allocation5 + $0x2c8] sm:$0xff]
        %v1138 = vld [vmem:[#allocation5 + $0x2d0] sm:$0xff]
        %v1139 = vld [vmem:[#allocation5 + $0x2d8] sm:$0xff]
        %v1140 = vld [vmem:[#allocation5 + $0x2e0] sm:$0xff]
        %v1141 = vld [vmem:[#allocation5 + $0x2e8] sm:$0xff]
        %v1142 = vld [vmem:[#allocation5 + $0x2f0] sm:$0xff]
        %v1143 = vld [vmem:[#allocation5 + $0x2f8] sm:$0xff]
        %v1144 = vld [vmem:[#allocation5 + $0x300] sm:$0xff]
        %v1145 = vld [vmem:[#allocation5 + $0x308] sm:$0xff]
        %v1146 = vld [vmem:[#allocation5 + $0x310] sm:$0xff]
        %v1147 = vld [vmem:[#allocation5 + $0x318] sm:$0xff]
        %v1148 = vld [vmem:[#allocation5 + $0x320] sm:$0xff]
        %v1149 = vld [vmem:[#allocation5 + $0x328] sm:$0xff]
        %v1150 = vld [vmem:[#allocation5 + $0x330] sm:$0xff]
        %v1151 = vld [vmem:[#allocation5 + $0x338] sm:$0xff]
        %v1152 = vld [vmem:[#allocation5 + $0x340] sm:$0xff]
        %v1153 = vld [vmem:[#allocation5 + $0x348] sm:$0xff]
        %v1154 = vld [vmem:[#allocation5 + $0x350] sm:$0xff]
        %v1155 = vld [vmem:[#allocation5 + $0x358] sm:$0xff]
        %v1156 = vld [vmem:[#allocation5 + $0x360] sm:$0xff]
        %v1157 = vld [vmem:[#allocation5 + $0x368] sm:$0xff]
        %v1158 = vld [vmem:[#allocation5 + $0x370] sm:$0xff]
        %v1159 = vld [vmem:[#allocation5 + $0x378] sm:$0xff]
        %v1160 = vld [vmem:[#allocation5 + $0x380] sm:$0xff]
        %v1161 = vld [vmem:[#allocation5 + $0x388] sm:$0xff]
        %v1162 = vld [vmem:[#allocation5 + $0x390] sm:$0xff]
        %v1163 = vld [vmem:[#allocation5 + $0x398] sm:$0xff]
        %v1164 = vld [vmem:[#allocation5 + $0x3a0] sm:$0xff]
        %v1165 = vld [vmem:[#allocation5 + $0x3a8] sm:$0xff]
        %v1166 = vld [vmem:[#allocation5 + $0x3b0] sm:$0xff]
        %v1167 = vld [vmem:[#allocation5 + $0x3b8] sm:$0xff]
        %v1168 = vld [vmem:[#allocation5 + $0x3c0] sm:$0xff]
        %v1169 = vld [vmem:[#allocation5 + $0x3c8] sm:$0xff]
        %v1170 = vld [vmem:[#allocation5 + $0x3d0] sm:$0xff]
        %v1171 = vld [vmem:[#allocation5 + $0x3d8] sm:$0xff]
        %v1172 = vld [vmem:[#allocation5 + $0x3e0] sm:$0xff]
        %v1173 = vld [vmem:[#allocation5 + $0x3e8] sm:$0xff]
        %v1174 = vld [vmem:[#allocation5 + $0x3f0] sm:$0xff]
        %v1175 = vld [vmem:[#allocation5 + $0x3f8] sm:$0xff]
        %1176 = vmatprep.subr.mxu0 %v1049
        %1177 = vmatpush1.msra.mxu0 %v1048
        %1178 = vmatprep.subr.mxu0 %v1051
        %1179 = vmatpush1.msra.mxu0 %v1050
        %1180 = vmatprep.subr.mxu0 %v1053
        %1181 = vmatpush1.msra.mxu0 %v1052
        %1182 = vmatprep.subr.mxu0 %v1055
        %1183 = vmatpush1.msra.mxu0 %v1054
        %1184 = vmatprep.subr.mxu0 %v1057
        %1185 = vmatpush1.msra.mxu0 %v1056
        %1186 = vmatprep.subr.mxu0 %v1059
        %1187 = vmatpush1.msra.mxu0 %v1058
        %1188 = vmatprep.subr.mxu0 %v1061
        %1189 = vmatpush1.msra.mxu0 %v1060
        %1190 = vmatprep.subr.mxu0 %v1063
        %1191 = vmatpush1.msra.mxu0 %v1062
        %1192 = vmatprep.subr.mxu0 %v1065
        %1193 = vmatpush1.msra.mxu0 %v1064
        %1194 = vmatprep.subr.mxu0 %v1067
        %1195 = vmatpush1.msra.mxu0 %v1066
        %1196 = vmatprep.subr.mxu0 %v1069
        %1197 = vmatpush1.msra.mxu0 %v1068
        %1198 = vmatprep.subr.mxu0 %v1071
        %1199 = vmatpush1.msra.mxu0 %v1070
        %1200 = vmatprep.subr.mxu0 %v1073
        %1201 = vmatpush1.msra.mxu0 %v1072
        %1202 = vmatprep.subr.mxu0 %v1075
        %1203 = vmatpush1.msra.mxu0 %v1074
        %1204 = vmatprep.subr.mxu0 %v1077
        %1205 = vmatpush1.msra.mxu0 %v1076
        %1206 = vmatprep.subr.mxu0 %v1079
        %1207 = vmatpush1.msra.mxu0 %v1078
        %1208 = vmatprep.subr.mxu0 %v1081
        %1209 = vmatpush1.msra.mxu0 %v1080
        %1210 = vmatprep.subr.mxu0 %v1083
        %1211 = vmatpush1.msra.mxu0 %v1082
        %1212 = vmatprep.subr.mxu0 %v1085
        %1213 = vmatpush1.msra.mxu0 %v1084
        %1214 = vmatprep.subr.mxu0 %v1087
        %1215 = vmatpush1.msra.mxu0 %v1086
        %1216 = vmatprep.subr.mxu0 %v1089
        %1217 = vmatpush1.msra.mxu0 %v1088
        %1218 = vmatprep.subr.mxu0 %v1091
        %1219 = vmatpush1.msra.mxu0 %v1090
        %1220 = vmatprep.subr.mxu0 %v1093
        %1221 = vmatpush1.msra.mxu0 %v1092
        %1222 = vmatprep.subr.mxu0 %v1095
        %1223 = vmatpush1.msra.mxu0 %v1094
        %1224 = vmatprep.subr.mxu0 %v1097
        %1225 = vmatpush1.msra.mxu0 %v1096
        %1226 = vmatprep.subr.mxu0 %v1099
        %1227 = vmatpush1.msra.mxu0 %v1098
        %1228 = vmatprep.subr.mxu0 %v1101
        %1229 = vmatpush1.msra.mxu0 %v1100
        %1230 = vmatprep.subr.mxu0 %v1103
        %1231 = vmatpush1.msra.mxu0 %v1102
        %1232 = vmatprep.subr.mxu0 %v1105
        %1233 = vmatpush1.msra.mxu0 %v1104
        %1234 = vmatprep.subr.mxu0 %v1107
        %1235 = vmatpush1.msra.mxu0 %v1106
        %1236 = vmatprep.subr.mxu0 %v1109
        %1237 = vmatpush1.msra.mxu0 %v1108
        %1238 = vmatprep.subr.mxu0 %v1111
        %1239 = vmatpush1.msra.mxu0 %v1110
        %1240 = vmatprep.mubr.f32.mxu0 %v1029
        %1241 = vmatmul.mubr.f32.gmra.mrb[0].mxu0 %v1026
        %v1242 = vpop.f32.mrb[0].mxu0
        %v1243 = vadd.f32 0.0, %v1242
        %v1244 = vpop.f32.mrb[0].mxu0
        %v1245 = vadd.f32 0.0, %v1244
        %1246 = vdwg.mxu0
        %1247 = vmatprep.subr.mxu0 %v1113
        %1248 = vmatpush1.msra.mxu0 %v1112
        %1249 = vmatprep.subr.mxu0 %v1115
        %1250 = vmatpush1.msra.mxu0 %v1114
        %1251 = vmatprep.subr.mxu0 %v1117
        %1252 = vmatpush1.msra.mxu0 %v1116
        %1253 = vmatprep.subr.mxu0 %v1119
        %1254 = vmatpush1.msra.mxu0 %v1118
        %1255 = vmatprep.subr.mxu0 %v1121
        %1256 = vmatpush1.msra.mxu0 %v1120
        %1257 = vmatprep.subr.mxu0 %v1123
        %1258 = vmatpush1.msra.mxu0 %v1122
        %1259 = vmatprep.subr.mxu0 %v1125
        %1260 = vmatpush1.msra.mxu0 %v1124
        %1261 = vmatprep.subr.mxu0 %v1127
        %1262 = vmatpush1.msra.mxu0 %v1126
        %1263 = vmatprep.subr.mxu0 %v1129
        %1264 = vmatpush1.msra.mxu0 %v1128
        %1265 = vmatprep.subr.mxu0 %v1131
        %1266 = vmatpush1.msra.mxu0 %v1130
        %1267 = vmatprep.subr.mxu0 %v1133
        %1268 = vmatpush1.msra.mxu0 %v1132
        %1269 = vmatprep.subr.mxu0 %v1135
        %1270 = vmatpush1.msra.mxu0 %v1134
        %1271 = vmatprep.subr.mxu0 %v1137
        %1272 = vmatpush1.msra.mxu0 %v1136
        %1273 = vmatprep.subr.mxu0 %v1139
        %1274 = vmatpush1.msra.mxu0 %v1138
        %1275 = vmatprep.subr.mxu0 %v1141
        %1276 = vmatpush1.msra.mxu0 %v1140
        %1277 = vmatprep.subr.mxu0 %v1143
        %1278 = vmatpush1.msra.mxu0 %v1142
        %1279 = vmatprep.subr.mxu0 %v1145
        %1280 = vmatpush1.msra.mxu0 %v1144
        %1281 = vmatprep.subr.mxu0 %v1147
        %1282 = vmatpush1.msra.mxu0 %v1146
        %1283 = vmatprep.subr.mxu0 %v1149
        %1284 = vmatpush1.msra.mxu0 %v1148
        %1285 = vmatprep.subr.mxu0 %v1151
        %1286 = vmatpush1.msra.mxu0 %v1150
        %1287 = vmatprep.subr.mxu0 %v1153
        %1288 = vmatpush1.msra.mxu0 %v1152
        %1289 = vmatprep.subr.mxu0 %v1155
        %1290 = vmatpush1.msra.mxu0 %v1154
        %1291 = vmatprep.subr.mxu0 %v1157
        %1292 = vmatpush1.msra.mxu0 %v1156
        %1293 = vmatprep.subr.mxu0 %v1159
        %1294 = vmatpush1.msra.mxu0 %v1158
        %1295 = vmatprep.subr.mxu0 %v1161
        %1296 = vmatpush1.msra.mxu0 %v1160
        %1297 = vmatprep.subr.mxu0 %v1163
        %1298 = vmatpush1.msra.mxu0 %v1162
        %1299 = vmatprep.subr.mxu0 %v1165
        %1300 = vmatpush1.msra.mxu0 %v1164
        %1301 = vmatprep.subr.mxu0 %v1167
        %1302 = vmatpush1.msra.mxu0 %v1166
        %1303 = vmatprep.subr.mxu0 %v1169
        %1304 = vmatpush1.msra.mxu0 %v1168
        %1305 = vmatprep.subr.mxu0 %v1171
        %1306 = vmatpush1.msra.mxu0 %v1170
        %1307 = vmatprep.subr.mxu0 %v1173
        %1308 = vmatpush1.msra.mxu0 %v1172
        %1309 = vmatprep.subr.mxu0 %v1175
        %1310 = vmatpush1.msra.mxu0 %v1174
        %1311 = vmatprep.mubr.f32.mxu0 %v1045
        %1312 = vmatmul.mubr.f32.gmra.mrb[0].mxu0 %v1042
        %v1313 = vpop.f32.mrb[0].mxu0
        %v1314 = vadd.f32 %v1243, %v1313
        %v1315 = vpop.f32.mrb[0].mxu0
        %v1316 = vadd.f32 %v1245, %v1315
        %1317 = vdwg.mxu0
        %v1318 = vxor.u32 %v1314, 2147483648
        %v1319 = vxor.u32 %v1316, 2147483648
        %v1320 = vmul.f32 %v1318, 1.442695
        %v1321 = vpow.pop %v1320
        %v1322 = vmul.f32 %v1319, 1.442695
        %v1323 = vpow.pop %v1322
        %v1324 = vadd.f32 %v1321, 1.0
        %v1325 = vadd.f32 %v1323, 1.0
        %v1326 = vrcp.pop %v1324
        %v1327 = vmul.f32 1.0, %v1326
        %v1328 = vrcp.pop %v1325
        %v1329 = vmul.f32 1.0, %v1328
        %v1332 = vcombine.low %v1327, %v1329
        %v1334 = vunpack.c.l.s4 1966171168
        %v1335 = vunpack.c.0.s8 %v1334
        %v1336 = vlaneseq
        %v1337 = vshrl.u32 %v1336, 7
        %v1338 = vsub.s32 %v1335, %v1337
        %v1339 = vrot.slane %v1332, %v1338
        %v1340 = vcombine.high %v1339, %v1339
        %v1342 = vunpack.c.l.s4 1966171168
        %v1343 = vunpack.c.0.s8 %v1342
        %v1344 = vlaneseq
        %v1345 = vshrl.u32 %v1344, 7
        %v1346 = vsub.s32 %v1343, %v1345
        %v1347 = vrot.slane %v1339, %v1346
        %v1349 = vunpack.c.l.s4 1966171168
        %v1350 = vunpack.c.0.s8 %v1349
        %v1351 = vlaneseq
        %v1352 = vshrl.u32 %v1351, 7
        %v1353 = vsub.s32 %v1350, %v1352
        %v1354 = vrot.slane %v1340, %v1353
        %v1355 = vcombine.high %v1347, %v1347
        %v1356 = vcombine.high %v1354, %v1354
        %v1357 = vlaneseq
        %v1358 = vshrl.u32 %v1357, 7
        %v1359 = vsub.s32 0, %v1358
        %v1360 = vrot.slane %v1347, %v1359
        %v1361 = vlaneseq
        %v1362 = vshrl.u32 %v1361, 7
        %v1363 = vsub.s32 1, %v1362
        %v1364 = vrot.slane %v1347, %v1363
        %v1365 = vlaneseq
        %v1366 = vshrl.u32 %v1365, 7
        %v1367 = vsub.s32 0, %v1366
        %v1368 = vrot.slane %v1354, %v1367
        %v1369 = vlaneseq
        %v1370 = vshrl.u32 %v1369, 7
        %v1371 = vsub.s32 1, %v1370
        %v1372 = vrot.slane %v1354, %v1371
        %v1373 = vlaneseq
        %v1374 = vshrl.u32 %v1373, 7
        %v1375 = vsub.s32 0, %v1374
        %v1376 = vrot.slane %v1355, %v1375
        %v1377 = vlaneseq
        %v1378 = vshrl.u32 %v1377, 7
        %v1379 = vsub.s32 1, %v1378
        %v1380 = vrot.slane %v1355, %v1379
        %v1381 = vlaneseq
        %v1382 = vshrl.u32 %v1381, 7
        %v1383 = vsub.s32 0, %v1382
        %v1384 = vrot.slane %v1356, %v1383
        %v1385 = vlaneseq
        %v1386 = vshrl.u32 %v1385, 7
        %v1387 = vsub.s32 1, %v1386
        %v1388 = vrot.slane %v1356, %v1387
        %v1397 = vmul.f32 %v831, %v1360
        %v1398 = vmul.f32 %v832, %v1364
        %v1399 = vmul.f32 %v833, %v1360
        %v1400 = vmul.f32 %v834, %v1364
        %v1401 = vmul.f32 %v835, %v1360
        %v1402 = vmul.f32 %v836, %v1364
        %v1403 = vmul.f32 %v837, %v1360
        %v1404 = vmul.f32 %v838, %v1364
        %v1405 = vmul.f32 %v839, %v1368
        %v1406 = vmul.f32 %v840, %v1372
        %v1407 = vmul.f32 %v841, %v1368
        %v1408 = vmul.f32 %v842, %v1372
        %v1409 = vmul.f32 %v843, %v1368
        %v1410 = vmul.f32 %v844, %v1372
        %v1411 = vmul.f32 %v845, %v1368
        %v1412 = vmul.f32 %v846, %v1372
        %v1413 = vmul.f32 %v847, %v1376
        %v1414 = vmul.f32 %v848, %v1380
        %v1415 = vmul.f32 %v849, %v1376
        %v1416 = vmul.f32 %v850, %v1380
        %v1417 = vmul.f32 %v851, %v1376
        %v1418 = vmul.f32 %v852, %v1380
        %v1419 = vmul.f32 %v853, %v1376
        %v1420 = vmul.f32 %v854, %v1380
        %v1421 = vmul.f32 %v855, %v1384
        %v1422 = vmul.f32 %v856, %v1388
        %v1423 = vmul.f32 %v857, %v1384
        %v1424 = vmul.f32 %v858, %v1388
        %v1425 = vmul.f32 %v859, %v1384
        %v1426 = vmul.f32 %v860, %v1388
        %v1427 = vmul.f32 %v861, %v1384
        %v1428 = vmul.f32 %v862, %v1388
        %1429 = vst [vmem:[%s231] sm:$0xff] %v1397
        %1430 = vst [vmem:[%s231 + $0x8] sm:$0xff] %v1398
        %1431 = vst [vmem:[%s231 + $0x10] sm:$0xff] %v1399
        %1432 = vst [vmem:[%s231 + $0x18] sm:$0xff] %v1400
        %1433 = vst [vmem:[%s231 + $0x20] sm:$0xff] %v1401
        %1434 = vst [vmem:[%s231 + $0x28] sm:$0xff] %v1402
        %1435 = vst [vmem:[%s231 + $0x30] sm:$0xff] %v1403
        %1436 = vst [vmem:[%s231 + $0x38] sm:$0xff] %v1404
        %1437 = vst [vmem:[%s231 + $0x40] sm:$0xff] %v1405
        %1438 = vst [vmem:[%s231 + $0x48] sm:$0xff] %v1406
        %1439 = vst [vmem:[%s231 + $0x50] sm:$0xff] %v1407
        %1440 = vst [vmem:[%s231 + $0x58] sm:$0xff] %v1408
        %1441 = vst [vmem:[%s231 + $0x60] sm:$0xff] %v1409
        %1442 = vst [vmem:[%s231 + $0x68] sm:$0xff] %v1410
        %1443 = vst [vmem:[%s231 + $0x70] sm:$0xff] %v1411
        %1444 = vst [vmem:[%s231 + $0x78] sm:$0xff] %v1412
        %1445 = vst [vmem:[%s231 + $0x80] sm:$0xff] %v1413
        %1446 = vst [vmem:[%s231 + $0x88] sm:$0xff] %v1414
        %1447 = vst [vmem:[%s231 + $0x90] sm:$0xff] %v1415
        %1448 = vst [vmem:[%s231 + $0x98] sm:$0xff] %v1416
        %1449 = vst [vmem:[%s231 + $0xa0] sm:$0xff] %v1417
        %1450 = vst [vmem:[%s231 + $0xa8] sm:$0xff] %v1418
        %1451 = vst [vmem:[%s231 + $0xb0] sm:$0xff] %v1419
        %1452 = vst [vmem:[%s231 + $0xb8] sm:$0xff] %v1420
        %1453 = vst [vmem:[%s231 + $0xc0] sm:$0xff] %v1421
        %1454 = vst [vmem:[%s231 + $0xc8] sm:$0xff] %v1422
        %1455 = vst [vmem:[%s231 + $0xd0] sm:$0xff] %v1423
        %1456 = vst [vmem:[%s231 + $0xd8] sm:$0xff] %v1424
        %1457 = vst [vmem:[%s231 + $0xe0] sm:$0xff] %v1425
        %1458 = vst [vmem:[%s231 + $0xe8] sm:$0xff] %v1426
        %1459 = vst [vmem:[%s231 + $0xf0] sm:$0xff] %v1427
        %1460 = vst [vmem:[%s231 + $0xf8] sm:$0xff] %v1428
        %s1461 = sand.u32 %s119, 1
        %s1462 = scalar_lea.sflag [#allocation4], %s1461
        %s1463 = sand.u32 %s119, 1
        %s1464 = smul.addr %s1463, 256
        %s1465 = scalar_lea.vmem [#allocation7], %s1464
        // Predicated region
        $region45: #{tpu_custom_call.1} parent=35 // pred_check
          %p1466 = pneg %p129
        $region46: #{tpu_custom_call.1} parent=35 // pred_check_branch
          %1468 = sbr.rel (%p1466) target = $region48
        $region47: #{tpu_custom_call.1} parent=35 // pred_region
          %s1469 = smul.u32 4, %s22
          %s1471 = ssub.s32 4096, 4096
          %1472 = vsyncadd %s1462, %s1471
          %s1473 = smul.addr %s1469, 8
          %s1474 = smul.addr %s1473, 128
          %s1475 = scalar_lea.hbm %s4, %s1474
          %s1476 = sshll.u32 %s1465, 4
          %s1477 = int_to_ptr.vmem [resolvable:$true] %s1476
          %1482 = dma.vmem_to_hbm [thread:$0]  %s1477, 4096, %s1475, %s1462, 256, 256, 16
        $region48: #{tpu_custom_call.1} parent=35 // pred_fallthru
          _
      $region36: #{tpu_custom_call.1} parent=5 // pred_fallthru
        _
      %p1483 = scmp.le.s32.totalorder 2, %s17
      // Predicated region
      $region49: #{tpu_custom_call.1} parent=5 // pred_check
        %p1484 = pneg %p1483
      $region50: #{tpu_custom_call.1} parent=5 // pred_check_branch
        %1486 = sbr.rel (%p1484) target = $region52
      $region51: #{tpu_custom_call.1} parent=5 // pred_region
        %s1487 = ssub.s32 %s17, 2
        // Predicated region
        $region53: #{tpu_custom_call.1} parent=51 // pred_check
          %p1488 = pneg %p135
        $region54: #{tpu_custom_call.1} parent=51 // pred_check_branch
          %1490 = sbr.rel (%p1488) target = $region56
        $region55: #{tpu_custom_call.1} parent=51 // pred_region
          %s1491 = sand.u32 %s120, 1
          %s1492 = scalar_lea.sflag [#allocation4], %s1491
          %s1493 = sand.u32 %s120, 1
          %s1494 = smul.addr %s1493, 256
          %s1495 = scalar_lea.vmem [#allocation7], %s1494
          %1496 = dma.done %s1492, 4096
        $region56: #{tpu_custom_call.1} parent=51 // pred_fallthru
          _
      $region52: #{tpu_custom_call.1} parent=5 // pred_fallthru
        _
    $region6: #{tpu_custom_call.1} parent=1 // loop_footer
      %s21 = sadd.s32 1, %s17
    $region7: #{tpu_custom_call.1} parent=1 // loop_footer_branch
      %16 = sbr.rel target = $region3
    $region8: #{tpu_custom_call.1} parent=1 // loop_exit
      _
    %1497 = vsyncpa [#allocation3], 1
    %s1498 = scalar_lea.sflag [#allocation3], 1
    %1499 = vsyncpa %s1498, 1
    %1500 = vsyncpa [#allocation6], 1
    %1501 = vsyncpa [#allocation4], 1
    %s1502 = scalar_lea.sflag [#allocation4], 1
    %1503 = vsyncpa %s1502, 1

</llo_original>
